<compile_context>
chip_gen: v7x
topology: tpu7x:2x2x1
jax: 0.10.0
libtpu: 0.0.40
codegen_flags: <defaults>
</compile_context>

<pallas_src>
import functools

import jax
import jax.numpy as jnp
from jax import lax
from jax.experimental import pallas as pl
from jax.experimental.pallas import tpu as pltpu


def _aggregate_kernel(gamma_ref, q_ref, k_ref, fmap_ref, w_ref, o_ref,
                      *, heads, dim_head, scale):
    fmap = fmap_ref[0]                                    # (dim, HW)
    w = w_ref[...]                                        # (inner_dim, dim)
    hw = fmap.shape[-1]

    # 1x1 conv for ALL heads in one MXU call (channel-major V): (inner_dim, HW)
    v_all = jnp.dot(w, fmap, preferred_element_type=jnp.float32)

    gamma = gamma_ref[0]

    # Scale Q before the matmul (cheapest place: dh*HW elems, not HW^2).
    q = q_ref[0] * scale                                  # (heads, dh, HW_q)
    k = k_ref[0]                                          # (heads, dh, HW_k)

    # sim_t[h, j, i] = k[h,:,j] . (scale * q[h,:,i])  — head-batched, contraction
    # on dim_head, no transposed operand materialized.
    sim_t = lax.dot_general(
        k, q, dimension_numbers=(((1,), (1,)), ((0,), (0,))),
        preferred_element_type=jnp.float32)               # (heads, HW_k, HW_q)

    # Softmax over the key axis (axis 1) — stats land lane-major (heads, 1, HW_q).
    m = jnp.max(sim_t, axis=1, keepdims=True)
    p = jnp.exp(sim_t - m)                                # unnormalized probs
    denom = jnp.sum(p, axis=1, keepdims=True)             # (heads, 1, HW_q)

    # Deferred softmax normalization fused with gamma; reciprocal on the EUP.
    norm = gamma * pl.reciprocal(denom, approx=True)      # (heads, 1, HW_q)

    # Unnormalized attention output, channel-major, head-batched: (heads, dh, HW_q)
    v3 = v_all.reshape(heads, dim_head, hw)               # tile-aligned split (dh=128)
    out_u = lax.dot_general(
        v3, p, dimension_numbers=(((2,), (1,)), ((0,), (0,))),
        preferred_element_type=jnp.float32)

    # Gated residual, then one big lane-dense store.
    res = fmap.reshape(heads, dim_head, hw)
    out = res + out_u * norm
    o_ref[0] = out.reshape(heads * dim_head, hw).astype(o_ref.dtype)


def aggregate_pallas(querys, keys, fmap, v_weight, gamma, *, heads, dim_head):
    """querys/keys: (B, heads*dim_head, H, W) NCHW; fmap: (B, dim, H, W) NCHW;
    v_weight: (heads*dim_head, dim)  (nn.Conv2d 1x1 weight, k-dims squeezed);
    gamma: (1,) float32."""
    b, dim, H, W = fmap.shape
    hw = H * W
    inner_dim = heads * dim_head
    # The residual add only makes sense if the attention output has `dim` channels.
    assert dim == inner_dim, "Aggregate residual requires dim == heads * dim_head"
    assert querys.shape == (b, inner_dim, H, W)
    assert keys.shape == (b, inner_dim, H, W)
    assert v_weight.shape == (inner_dim, dim)
    scale = dim_head ** -0.5

    # Channel-major layouts: pure reshapes, zero HBM transposes.
    q3 = querys.reshape(b, heads, dim_head, hw)      # 'b (h d) x y -> b h d (x y)'
    k3 = keys.reshape(b, heads, dim_head, hw)
    fmap_flat = fmap.reshape(b, dim, hw)             # 'b c x y -> b c (x y)'

    out = pl.pallas_call(
        functools.partial(_aggregate_kernel,
                          heads=heads, dim_head=dim_head, scale=scale),
        out_shape=jax.ShapeDtypeStruct((b, inner_dim, hw), fmap.dtype),
        grid_spec=pltpu.PrefetchScalarGridSpec(
            num_scalar_prefetch=0,
            grid=(b,),
            in_specs=[
                pl.BlockSpec(memory_space=pltpu.MemorySpace.SMEM),   # gamma (1,)
                pl.BlockSpec((1, heads, dim_head, hw), lambda bi: (bi, 0, 0, 0)),
                pl.BlockSpec((1, heads, dim_head, hw), lambda bi: (bi, 0, 0, 0)),
                pl.BlockSpec((1, dim, hw), lambda bi: (bi, 0, 0)),
                pl.BlockSpec((inner_dim, dim), lambda bi: (0, 0)),
            ],
            out_specs=pl.BlockSpec((1, inner_dim, hw), lambda bi: (bi, 0, 0)),
        ),
        compiler_params=pltpu.CompilerParams(
            dimension_semantics=("parallel",),
            vmem_limit_bytes=64 << 20),
    )(gamma, q3, k3, fmap_flat, v_weight)

    return out.reshape(b, dim, H, W)                 # pure reshape, no transpose


def aggregate_reference(querys, keys, fmap, v_weight, gamma, *, heads, dim_head):
    """Pure-JAX re-implementation of the PyTorch forward (non-flash branch)."""
    b, dim, H, W = fmap.shape
    scale = dim_head ** -0.5
    v = jnp.einsum('bchw,oc->bohw', fmap, v_weight)            # 1x1 conv, no bias

    def split(t):  # 'b (h d) x y -> b h (x y) d'
        return t.reshape(b, heads, dim_head, H * W).transpose(0, 1, 3, 2)

    qq = split(querys) * scale
    kk = split(keys)
    vv = split(v)
    sim = jnp.einsum('bhid,bhjd->bhij', qq, kk)
    attn = jax.nn.softmax(sim, axis=-1)
    o = jnp.einsum('bhij,bhjd->bhid', attn, vv)
    o = o.transpose(0, 1, 3, 2).reshape(b, heads * dim_head, H, W)
    return fmap + gamma[0] * o


if __name__ == "__main__":
    heads, dim_head = 2, 128
    dim = heads * dim_head          # residual add requires dim == heads*dim_head
    b, H, W = 2, 16, 16             # HW = 256 -> lane-dense channel-major output

    key = jax.random.PRNGKey(0)
    kq, kk, kf, kw = jax.random.split(key, 4)
    querys = jax.random.normal(kq, (b, heads * dim_head, H, W), jnp.float32)
    keys = jax.random.normal(kk, (b, heads * dim_head, H, W), jnp.float32)
    fmap = jax.random.normal(kf, (b, dim, H, W), jnp.float32)
    # nn.Conv2d(dim, inner_dim, 1, bias=False).weight has shape (inner_dim, dim, 1, 1)
    v_weight = jax.random.normal(kw, (heads * dim_head, dim), jnp.float32) * (1.0 / dim) ** 0.5
    # NOTE: PyTorch __init__ sets gamma = 0 (which makes out == fmap exactly);
    # use a deterministic nonzero value here so the attention path is exercised.
    gamma = jnp.array([0.1], dtype=jnp.float32)

    out = aggregate_pallas(querys, keys, fmap, v_weight, gamma,
                           heads=heads, dim_head=dim_head)
    out = jax.block_until_ready(out)

    ref = aggregate_reference(querys, keys, fmap, v_weight, gamma,
                              heads=heads, dim_head=dim_head)
    assert out.shape == fmap.shape and out.dtype == fmap.dtype
    # tolerance covers the EUP approximate-reciprocal softmax normalization
    assert jnp.allclose(out, ref, rtol=2e-3, atol=2e-3), "mismatch vs reference"
    print("KERNEL_OK")
</pallas_src>

<mosaic_0001>
module attributes {stable_mosaic.version = 11 : i64} {
  func.func @_aggregate_kernel(%arg0: i32, %arg1: memref<1xf32, #tpu.memory_space<smem>>, %arg2: memref<1x2x128x256xf32, #tpu.memory_space<vmem>>, %arg3: memref<1x2x128x256xf32, #tpu.memory_space<vmem>>, %arg4: memref<1x256x256xf32, #tpu.memory_space<vmem>>, %arg5: memref<256x256xf32, #tpu.memory_space<vmem>>, %arg6: memref<1x256x256xf32, #tpu.memory_space<vmem>>) attributes {dimension_semantics = [#tpu.dimension_semantics<parallel>], iteration_bounds = array<i64: 2>, scalar_prefetch = 0 : i64, scratch_operands = 0 : i64, tpu.core_type = #tpu.core_type<tc>, window_params = [{transform_indices = @transform_0, window_bounds = array<i64: 1>}, {transform_indices = @transform_1, window_bounds = array<i64: 1, 2, 128, 256>}, {transform_indices = @transform_2, window_bounds = array<i64: 1, 2, 128, 256>}, {transform_indices = @transform_3, window_bounds = array<i64: 1, 256, 256>}, {pipeline_mode = #tpu.pipeline_mode<synchronous>, transform_indices = @transform_4, window_bounds = array<i64: 256, 256>}, {transform_indices = @transform_5, window_bounds = array<i64: 1, 256, 256>}]} {
    %c0 = arith.constant 0 : index
    %c0_0 = arith.constant 0 : index
    %c0_1 = arith.constant 0 : index
    %0 = vector.load %arg4[%c0, %c0_0, %c0_1] : memref<1x256x256xf32, #tpu.memory_space<vmem>>, vector<1x256x256xf32>
    %1 = vector.shape_cast %0 : vector<1x256x256xf32> to vector<256x256xf32>
    %c0_2 = arith.constant 0 : index
    %c0_3 = arith.constant 0 : index
    %2 = vector.load %arg5[%c0_2, %c0_3] : memref<256x256xf32, #tpu.memory_space<vmem>>, vector<256x256xf32>
    %cst = arith.constant dense<0.000000e+00> : vector<256x256xf32>
    %3 = tpu.matmul %2, %1, %cst {dimension_numbers = #tpu.dot_dimension_numbers<[1], [0], [0], [1], [0, 0, 1, 1], [], []>} : vector<256x256xf32>, vector<256x256xf32>, vector<256x256xf32> -> vector<256x256xf32>
    %c0_4 = arith.constant 0 : index
    %4 = memref.load %arg1[%c0_4] : memref<1xf32, #tpu.memory_space<smem>>
    %c0_5 = arith.constant 0 : index
    %c0_6 = arith.constant 0 : index
    %c0_7 = arith.constant 0 : index
    %c0_8 = arith.constant 0 : index
    %5 = vector.load %arg2[%c0_5, %c0_6, %c0_7, %c0_8] : memref<1x2x128x256xf32, #tpu.memory_space<vmem>>, vector<1x2x128x256xf32>
    %6 = vector.shape_cast %5 : vector<1x2x128x256xf32> to vector<2x128x256xf32>
    %cst_9 = arith.constant 0.0883883461 : f32
    %7 = vector.broadcast %cst_9 : f32 to vector<2x128x256xf32>
    %8 = arith.mulf %6, %7 : vector<2x128x256xf32>
    %c0_10 = arith.constant 0 : index
    %c0_11 = arith.constant 0 : index
    %c0_12 = arith.constant 0 : index
    %c0_13 = arith.constant 0 : index
    %9 = vector.load %arg3[%c0_10, %c0_11, %c0_12, %c0_13] : memref<1x2x128x256xf32, #tpu.memory_space<vmem>>, vector<1x2x128x256xf32>
    %10 = vector.shape_cast %9 : vector<1x2x128x256xf32> to vector<2x128x256xf32>
    %cst_14 = arith.constant dense<0.000000e+00> : vector<2x256x256xf32>
    %11 = tpu.matmul %10, %8, %cst_14 {dimension_numbers = #tpu.dot_dimension_numbers<[1], [1], [2], [2], [0, 0, 0, 2, 1, 2], [0], [0]>} : vector<2x128x256xf32>, vector<2x128x256xf32>, vector<2x256x256xf32> -> vector<2x256x256xf32>
    %cst_15 = arith.constant dense<0xFF800000> : vector<2x256xf32>
    %12 = vector.multi_reduction <maximumf>, %11, %cst_15 [1] : vector<2x256x256xf32> to vector<2x256xf32>
    %13 = vector.shape_cast %12 : vector<2x256xf32> to vector<2x1x256xf32>
    %14 = vector.broadcast %13 : vector<2x1x256xf32> to vector<2x256x256xf32>
    %15 = arith.subf %11, %14 : vector<2x256x256xf32>
    %16 = math.exp %15 : vector<2x256x256xf32>
    %cst_16 = arith.constant dense<0.000000e+00> : vector<2x256xf32>
    %17 = vector.multi_reduction <add>, %16, %cst_16 [1] : vector<2x256x256xf32> to vector<2x256xf32>
    %18 = vector.shape_cast %17 : vector<2x256xf32> to vector<2x1x256xf32>
    %19 = tpu.reciprocal %18 {approx = true} : vector<2x1x256xf32> -> vector<2x1x256xf32>
    %20 = vector.broadcast %4 : f32 to vector<2x1x256xf32>
    %21 = arith.mulf %20, %19 : vector<2x1x256xf32>
    %22 = vector.shape_cast %3 : vector<256x256xf32> to vector<2x128x256xf32>
    %cst_17 = arith.constant dense<0.000000e+00> : vector<2x128x256xf32>
    %23 = tpu.matmul %22, %16, %cst_17 {dimension_numbers = #tpu.dot_dimension_numbers<[2], [1], [1], [2], [0, 0, 0, 1, 1, 2], [0], [0]>} : vector<2x128x256xf32>, vector<2x256x256xf32>, vector<2x128x256xf32> -> vector<2x128x256xf32>
    %24 = vector.shape_cast %1 : vector<256x256xf32> to vector<2x128x256xf32>
    %25 = vector.broadcast %21 : vector<2x1x256xf32> to vector<2x128x256xf32>
    %26 = arith.mulf %23, %25 : vector<2x128x256xf32>
    %27 = arith.addf %24, %26 : vector<2x128x256xf32>
    %28 = vector.shape_cast %27 : vector<2x128x256xf32> to vector<256x256xf32>
    %c0_18 = arith.constant 0 : index
    %c0_19 = arith.constant 0 : index
    %c0_20 = arith.constant 0 : index
    %29 = vector.load %arg6[%c0_18, %c0_19, %c0_20] : memref<1x256x256xf32, #tpu.memory_space<vmem>>, vector<1x256x256xf32>
    %30 = vector.shape_cast %29 : vector<1x256x256xf32> to vector<256x256xf32>
    %31 = vector.shape_cast %28 : vector<256x256xf32> to vector<1x256x256xf32>
    tpu.vector_store %arg6[%c0_18, %c0_19, %c0_20], %31 {strides = array<i32>} : memref<1x256x256xf32, #tpu.memory_space<vmem>>, vector<1x256x256xf32>,
    return
  }
  func.func @transform_0(%arg0: i32) -> i32 {
    %c0_i32 = arith.constant 0 : i32
    %c0_i32_0 = arith.constant 0 : i32
    return %c0_i32 : i32
  }
  func.func @transform_1(%arg0: i32) -> (i32, i32, i32, i32) {
    %c0_i32 = arith.constant 0 : i32
    %c0_i32_0 = arith.constant 0 : i32
    %c0_i32_1 = arith.constant 0 : i32
    %c0_i32_2 = arith.constant 0 : i32
    return %arg0, %c0_i32, %c0_i32_0, %c0_i32_1 : i32, i32, i32, i32
  }
  func.func @transform_2(%arg0: i32) -> (i32, i32, i32, i32) {
    %c0_i32 = arith.constant 0 : i32
    %c0_i32_0 = arith.constant 0 : i32
    %c0_i32_1 = arith.constant 0 : i32
    %c0_i32_2 = arith.constant 0 : i32
    return %arg0, %c0_i32, %c0_i32_0, %c0_i32_1 : i32, i32, i32, i32
  }
  func.func @transform_3(%arg0: i32) -> (i32, i32, i32) {
    %c0_i32 = arith.constant 0 : i32
    %c0_i32_0 = arith.constant 0 : i32
    %c0_i32_1 = arith.constant 0 : i32
    return %arg0, %c0_i32, %c0_i32_0 : i32, i32, i32
  }
  func.func @transform_4(%arg0: i32) -> (i32, i32) {
    %c0_i32 = arith.constant 0 : i32
    %c0_i32_0 = arith.constant 0 : i32
    %c0_i32_1 = arith.constant 0 : i32
    return %c0_i32, %c0_i32_0 : i32, i32
  }
  func.func @transform_5(%arg0: i32) -> (i32, i32, i32) {
    %c0_i32 = arith.constant 0 : i32
    %c0_i32_0 = arith.constant 0 : i32
    %c0_i32_1 = arith.constant 0 : i32
    return %arg0, %c0_i32, %c0_i32_0 : i32, i32, i32
  }
}

</mosaic_0001>

<llo_original>
// kernel: tpu_custom_call.1
$region0: #{tpu_custom_call.1}
  #allocation0 [shape = 'u32[]', space=smem, size = 0x4, offset = 0x4, fixed_abs, tag = 'smem constant byte address 0x4 - core index']
  #allocation1 [shape = 'u32[144,128]{1,0:T(1,128)}', space=vmem, size = 0x12000, scoped, tag = 'internal scratch']
  #allocation2 [shape = 'f32[1]{0:T(128)S(6)}', space=smem, size = 0x200, scoped, tag = 'scoped memory for tpu_custom_call.1']
  %s0 = inlined_call_operand.<no memory space> [shape: f32[1], index: 0, kind: input, shape index: {}]
  %s1 = inlined_call_operand.hbm [shape: f32[2,2,128,256], index: 1, kind: input, shape index: {}]
  %s2 = inlined_call_operand.hbm [shape: f32[2,2,128,256], index: 2, kind: input, shape index: {}]
  %s3 = inlined_call_operand.hbm [shape: f32[2,256,256], index: 3, kind: input, shape index: {}]
  %s4 = inlined_call_operand.hbm [shape: f32[256,256], index: 4, kind: input, shape index: {}]
  %s5 = inlined_call_operand.hbm [shape: f32[2,256,256], index: 5, kind: output, shape index: {}]
  %s6 = sld [smem:[#allocation0]]
  $region69: #{tpu_custom_call.1} parent=0
    _
  %s8 = ssub.s32 1, %s6
  %s9 = scalar_select 0, %s8, %s6
  %10 = sst [smem:[#allocation2]] %s0
  $region1: #{tpu_custom_call.1} parent=0
    #allocation3 [shape = 'u8[524288]{0}', space=vmem, size = 0x80000, scoped, tag = 'input window, operand 1']
    #allocation4 [shape = 's32[2]{0}', space=sflag, size = 0x8, scoped, tag = 'scoped memory for tpu_custom_call.1']
    #allocation5 [shape = 's32[2]{0}', space=sflag, size = 0x8, scoped, tag = 'scoped memory for tpu_custom_call.1']
    #allocation6 [shape = 'u8[524288]{0}', space=vmem, size = 0x80000, scoped, tag = 'input window, operand 2']
    #allocation7 [shape = 's32[2]{0}', space=sflag, size = 0x8, scoped, tag = 'scoped memory for tpu_custom_call.1']
    #allocation8 [shape = 'u8[524288]{0}', space=vmem, size = 0x80000, scoped, tag = 'input window, operand 3']
    #allocation9 [shape = 'u8[262144]{0}', space=vmem, size = 0x40000, scoped, tag = 'input window, operand 4, single buffered']
    #allocation10 [shape = 's32[1]{0}', space=sflag, size = 0x4, scoped, tag = 'scoped memory for tpu_custom_call.1']
    #allocation11 [shape = 'u8[524288]{0}', space=vmem, size = 0x80000, scoped, tag = 'output window, operand 0']
    %11 = vsyncpa [#allocation4], 0
    %s12 = scalar_lea.sflag [#allocation4], 1
    %13 = vsyncpa %s12, 0
    %14 = vsyncpa [#allocation7], 0
    %s15 = scalar_lea.sflag [#allocation7], 1
    %16 = vsyncpa %s15, 0
    %17 = vsyncpa [#allocation10], 0
    %18 = vsyncpa [#allocation5], 0
    %s19 = scalar_lea.sflag [#allocation5], 1
    %20 = vsyncpa %s19, 0
    loop: start=0, step=1, limit=4
    $region2: #{tpu_custom_call.1} parent=1 // loop_pre_header
      _
    $region3: #{tpu_custom_call.1} parent=1 // loop_header
      %s22 = sphi 0, %s26
      %p23 = scmp.ge.s32.totalorder %s22, 4
      %s30 = sphi 0, %s30
      %s32 = sphi 0, %s30
      %s33 = sphi 0, %s32
      %s47 = sphi 0, %s33
      %s53 = sphi 0, %s55
      %s56 = sphi 0, %s53
      %s57 = sphi 0, %s56
      %s73 = sphi 0, %s57
      %s79 = sphi 0, %s81
      %s82 = sphi 0, %s79
      %s83 = sphi 0, %s82
      %s99 = sphi 0, %s83
      %s105 = sphi 0, %s107
      %s108 = sphi 0, %s105
      %s109 = sphi 0, %s108
      %s125 = sphi 0, %s109
      %s129 = sphi 0, %s129
      %s131 = sphi 0, %s129
      %s132 = sphi 0, %s131
      %s146 = sphi 0, %s132
      %s152 = sphi 0, %s154
      %s155 = sphi 0, %s152
      %s156 = sphi 0, %s155
      %s172 = sphi 0, %s156
    $region4: #{tpu_custom_call.1} parent=1 // loop_header_branch
      %25 = sbr.rel (%p23) target = $region8
    $region5: #{tpu_custom_call.1} parent=1 // loop_body
      %s27 = ssub.s32 %s22, 1
      %s28 = ssub.s32 %s22, 2
      %s29 = sadd.s32 %s22, 1
      %s31 = sadd.s32 %s30, 1
      %p34 = scmp.eq.s32.totalorder %s22, 1
      %p35 = scmp.ne.s32.totalorder %s30, %s32
      %p36 = scmp.eq.s32.totalorder %s22, 0
      %p37 = por %p35, %p36
      %p38 = scmp.ne.s32.totalorder %s30, %s32
      %p39 = scmp.eq.s32.totalorder %s27, 1
      %p40 = por %p38, %p39
      %p41 = scmp.ne.s32.totalorder %s32, %s33
      %p42 = scmp.eq.s32.totalorder %s27, 0
      %p43 = por %p41, %p42
      %p44 = scmp.ne.s32.totalorder %s32, %s33
      %p45 = scmp.eq.s32.totalorder %s28, 1
      %p46 = por %p44, %p45
      %p48 = scmp.ne.s32.totalorder %s33, %s47
      %p49 = scmp.eq.s32.totalorder %s28, 0
      %p50 = por %p48, %p49
      %s51 = ssub.s32 %s22, %s29
      %p52 = scmp.eq.s32.totalorder %s51, 0
      %s54 = sadd.s32 %s53, 1
      %s55 = scalar_select %p52, %s53, %s54
      %p58 = pneg %p52
      %p59 = scmp.eq.s32.totalorder %s22, 1
      %p60 = por %p58, %p59
      %p61 = scmp.ne.s32.totalorder %s53, %s56
      %p62 = scmp.eq.s32.totalorder %s22, 0
      %p63 = por %p61, %p62
      %p64 = scmp.ne.s32.totalorder %s53, %s56
      %p65 = scmp.eq.s32.totalorder %s27, 1
      %p66 = por %p64, %p65
      %p67 = scmp.ne.s32.totalorder %s56, %s57
      %p68 = scmp.eq.s32.totalorder %s27, 0
      %p69 = por %p67, %p68
      %p70 = scmp.ne.s32.totalorder %s56, %s57
      %p71 = scmp.eq.s32.totalorder %s28, 1
      %p72 = por %p70, %p71
      %p74 = scmp.ne.s32.totalorder %s57, %s73
      %p75 = scmp.eq.s32.totalorder %s28, 0
      %p76 = por %p74, %p75
      %s77 = ssub.s32 %s22, %s29
      %p78 = scmp.eq.s32.totalorder %s77, 0
      %s80 = sadd.s32 %s79, 1
      %s81 = scalar_select %p78, %s79, %s80
      %p84 = pneg %p78
      %p85 = scmp.eq.s32.totalorder %s22, 1
      %p86 = por %p84, %p85
      %p87 = scmp.ne.s32.totalorder %s79, %s82
      %p88 = scmp.eq.s32.totalorder %s22, 0
      %p89 = por %p87, %p88
      %p90 = scmp.ne.s32.totalorder %s79, %s82
      %p91 = scmp.eq.s32.totalorder %s27, 1
      %p92 = por %p90, %p91
      %p93 = scmp.ne.s32.totalorder %s82, %s83
      %p94 = scmp.eq.s32.totalorder %s27, 0
      %p95 = por %p93, %p94
      %p96 = scmp.ne.s32.totalorder %s82, %s83
      %p97 = scmp.eq.s32.totalorder %s28, 1
      %p98 = por %p96, %p97
      %p100 = scmp.ne.s32.totalorder %s83, %s99
      %p101 = scmp.eq.s32.totalorder %s28, 0
      %p102 = por %p100, %p101
      %s103 = ssub.s32 %s22, %s29
      %p104 = scmp.eq.s32.totalorder %s103, 0
      %s106 = sadd.s32 %s105, 1
      %s107 = scalar_select %p104, %s105, %s106
      %p110 = pneg %p104
      %p111 = scmp.eq.s32.totalorder %s22, 1
      %p112 = por %p110, %p111
      %p113 = scmp.ne.s32.totalorder %s105, %s108
      %p114 = scmp.eq.s32.totalorder %s22, 0
      %p115 = por %p113, %p114
      %p116 = scmp.ne.s32.totalorder %s105, %s108
      %p117 = scmp.eq.s32.totalorder %s27, 1
      %p118 = por %p116, %p117
      %p119 = scmp.ne.s32.totalorder %s108, %s109
      %p120 = scmp.eq.s32.totalorder %s27, 0
      %p121 = por %p119, %p120
      %p122 = scmp.ne.s32.totalorder %s108, %s109
      %p123 = scmp.eq.s32.totalorder %s28, 1
      %p124 = por %p122, %p123
      %p126 = scmp.ne.s32.totalorder %s109, %s125
      %p127 = scmp.eq.s32.totalorder %s28, 0
      %p128 = por %p126, %p127
      %s130 = sadd.s32 %s129, 1
      %p133 = scmp.eq.s32.totalorder %s22, 1
      %p134 = scmp.ne.s32.totalorder %s129, %s131
      %p135 = scmp.eq.s32.totalorder %s22, 0
      %p136 = por %p134, %p135
      %p137 = scmp.ne.s32.totalorder %s129, %s131
      %p138 = scmp.eq.s32.totalorder %s27, 1
      %p139 = por %p137, %p138
      %p140 = scmp.ne.s32.totalorder %s131, %s132
      %p141 = scmp.eq.s32.totalorder %s27, 0
      %p142 = por %p140, %p141
      %p143 = scmp.ne.s32.totalorder %s131, %s132
      %p144 = scmp.eq.s32.totalorder %s28, 1
      %p145 = por %p143, %p144
      %p147 = scmp.ne.s32.totalorder %s132, %s146
      %p148 = scmp.eq.s32.totalorder %s28, 0
      %p149 = por %p147, %p148
      %s150 = ssub.s32 %s22, %s29
      %p151 = scmp.eq.s32.totalorder %s150, 0
      %s153 = sadd.s32 %s152, 1
      %s154 = scalar_select %p151, %s152, %s153
      %p157 = pneg %p151
      %p158 = scmp.eq.s32.totalorder %s22, 1
      %p159 = por %p157, %p158
      %p160 = scmp.ne.s32.totalorder %s152, %s155
      %p161 = scmp.eq.s32.totalorder %s22, 0
      %p162 = por %p160, %p161
      %p163 = scmp.ne.s32.totalorder %s152, %s155
      %p164 = scmp.eq.s32.totalorder %s27, 1
      %p165 = por %p163, %p164
      %p166 = scmp.ne.s32.totalorder %s155, %s156
      %p167 = scmp.eq.s32.totalorder %s27, 0
      %p168 = por %p166, %p167
      %p169 = scmp.ne.s32.totalorder %s155, %s156
      %p170 = scmp.eq.s32.totalorder %s28, 1
      %p171 = por %p169, %p170
      %p173 = scmp.ne.s32.totalorder %s156, %s172
      %p174 = scmp.eq.s32.totalorder %s28, 0
      %p175 = por %p173, %p174
      %p176 = scmp.le.s32.totalorder 1, %s22
      %p177 = scmp.lt.s32.totalorder %s22, 3
      %p178 = pnand %p176, %p177
      %p179 = pneg %p178
      // Predicated region
      $region9: #{tpu_custom_call.1} parent=5 // pred_check
        _
      $region10: #{tpu_custom_call.1} parent=5 // pred_check_branch
        %181 = sbr.rel (%p178) target = $region12
      $region11: #{tpu_custom_call.1} parent=5 // pred_region
        %s182 = ssub.s32 %s22, 1
        // Predicated region
        $region13: #{tpu_custom_call.1} parent=11 // pred_check
          %p183 = pneg %p43
        $region14: #{tpu_custom_call.1} parent=11 // pred_check_branch
          %185 = sbr.rel (%p183) target = $region16
        $region15: #{tpu_custom_call.1} parent=11 // pred_region
          _
        $region16: #{tpu_custom_call.1} parent=11 // pred_fallthru
          _
        // Predicated region
        $region17: #{tpu_custom_call.1} parent=11 // pred_check
          %p186 = pneg %p142
        $region18: #{tpu_custom_call.1} parent=11 // pred_check_branch
          %188 = sbr.rel (%p186) target = $region20
        $region19: #{tpu_custom_call.1} parent=11 // pred_region
          %s190 = ssub.s32 8192, 8192
          %191 = vsyncadd [#allocation10], %s190
          %s192 = sshll.u32 [#allocation9], 4
          %s193 = int_to_ptr.vmem [resolvable:$true] %s192
          %198 = dma.hbm_to_vmem [thread:$0]  %s4, 8192, %s193, [#allocation10], 256, 256, 16
        $region20: #{tpu_custom_call.1} parent=11 // pred_fallthru
          _
      $region12: #{tpu_custom_call.1} parent=5 // pred_fallthru
        _
      %p199 = scmp.lt.s32.totalorder %s22, 2
      // Predicated region
      $region21: #{tpu_custom_call.1} parent=5 // pred_check
        %p200 = pneg %p199
      $region22: #{tpu_custom_call.1} parent=5 // pred_check_branch
        %202 = sbr.rel (%p200) target = $region24
      $region23: #{tpu_custom_call.1} parent=5 // pred_region
        // Predicated region
        $region25: #{tpu_custom_call.1} parent=23 // pred_check
          %p203 = pneg %p63
        $region26: #{tpu_custom_call.1} parent=23 // pred_check_branch
          %205 = sbr.rel (%p203) target = $region28
        $region27: #{tpu_custom_call.1} parent=23 // pred_region
          %s206 = sand.u32 %s53, 1
          %s207 = scalar_lea.sflag [#allocation4], %s206
          %s208 = sand.u32 %s53, 1
          %s209 = smul.addr %s208, 512
          %s210 = scalar_lea.vmem [#allocation3], %s209
          %s212 = ssub.s32 8192, 8192
          %213 = vsyncadd %s207, %s212
          %s214 = smul.addr %s22, 64
          %s215 = smul.addr %s214, 128
          %s216 = scalar_lea.hbm %s1, %s215
          %s217 = sshll.u32 %s210, 4
          %s218 = int_to_ptr.vmem [resolvable:$true] %s217
          %223 = dma.hbm_to_vmem [thread:$0]  %s216, 8192, %s218, %s207, 256, 256, 16
        $region28: #{tpu_custom_call.1} parent=23 // pred_fallthru
          _
        // Predicated region
        $region29: #{tpu_custom_call.1} parent=23 // pred_check
          %p224 = pneg %p89
        $region30: #{tpu_custom_call.1} parent=23 // pred_check_branch
          %226 = sbr.rel (%p224) target = $region32
        $region31: #{tpu_custom_call.1} parent=23 // pred_region
          %s227 = sand.u32 %s22, 1
          %s228 = scalar_lea.sflag [#allocation7], %s227
          %s229 = sand.u32 %s79, 1
          %s230 = smul.addr %s229, 512
          %s231 = scalar_lea.vmem [#allocation6], %s230
          %s233 = ssub.s32 8192, 8192
          %234 = vsyncadd %s228, %s233
          %s235 = smul.addr %s22, 64
          %s236 = smul.addr %s235, 128
          %s237 = scalar_lea.hbm %s2, %s236
          %s238 = sshll.u32 %s231, 4
          %s239 = int_to_ptr.vmem [resolvable:$true] %s238
          %244 = dma.hbm_to_vmem [thread:$0]  %s237, 8192, %s239, %s228, 256, 256, 16
        $region32: #{tpu_custom_call.1} parent=23 // pred_fallthru
          _
        // Predicated region
        $region33: #{tpu_custom_call.1} parent=23 // pred_check
          %p245 = pneg %p115
        $region34: #{tpu_custom_call.1} parent=23 // pred_check_branch
          %247 = sbr.rel (%p245) target = $region36
        $region35: #{tpu_custom_call.1} parent=23 // pred_region
          %s248 = sand.u32 %s22, 1
          %s249 = scalar_lea.sflag [#allocation7], %s248
          %s250 = sand.u32 %s105, 1
          %s251 = smul.addr %s250, 512
          %s252 = scalar_lea.vmem [#allocation8], %s251
          %s254 = ssub.s32 8192, 8192
          %255 = vsyncadd %s249, %s254
          %s256 = smul.addr %s22, 64
          %s257 = smul.addr %s256, 128
          %s258 = scalar_lea.hbm %s3, %s257
          %s259 = sshll.u32 %s252, 4
          %s260 = int_to_ptr.vmem [resolvable:$true] %s259
          %265 = dma.hbm_to_vmem [thread:$0]  %s258, 8192, %s260, %s249, 256, 256, 16
        $region36: #{tpu_custom_call.1} parent=23 // pred_fallthru
          _
      $region24: #{tpu_custom_call.1} parent=5 // pred_fallthru
        _
      %p266 = scmp.le.s32.totalorder 1, %s22
      %p267 = scmp.lt.s32.totalorder %s22, 3
      %p268 = pnand %p266, %p267
      %p269 = pneg %p268
      // Predicated region
      $region37: #{tpu_custom_call.1} parent=5 // pred_check
        _
      $region38: #{tpu_custom_call.1} parent=5 // pred_check_branch
        %271 = sbr.rel (%p268) target = $region40
      $region39: #{tpu_custom_call.1} parent=5 // pred_region
        %s272 = ssub.s32 %s22, 1
        %s273 = sand.u32 %s56, 1
        %s274 = scalar_lea.sflag [#allocation4], %s273
        %s275 = sand.u32 %s56, 1
        %s276 = smul.addr %s275, 512
        %s277 = scalar_lea.vmem [#allocation3], %s276
        // Predicated region
        $region41: #{tpu_custom_call.1} parent=39 // pred_check
          %p278 = pneg %p69
        $region42: #{tpu_custom_call.1} parent=39 // pred_check_branch
          %280 = sbr.rel (%p278) target = $region44
        $region43: #{tpu_custom_call.1} parent=39 // pred_region
          %281 = dma.done %s274, 8192
        $region44: #{tpu_custom_call.1} parent=39 // pred_fallthru
          _
        %s282 = sand.u32 %s27, 1
        %s283 = scalar_lea.sflag [#allocation7], %s282
        %s284 = sand.u32 %s82, 1
        %s285 = smul.addr %s284, 512
        %s286 = scalar_lea.vmem [#allocation6], %s285
        // Predicated region
        $region45: #{tpu_custom_call.1} parent=39 // pred_check
          %p287 = pneg %p95
        $region46: #{tpu_custom_call.1} parent=39 // pred_check_branch
          %289 = sbr.rel (%p287) target = $region48
        $region47: #{tpu_custom_call.1} parent=39 // pred_region
          %290 = dma.done %s283, 8192
        $region48: #{tpu_custom_call.1} parent=39 // pred_fallthru
          _
        %s291 = sand.u32 %s27, 1
        %s292 = scalar_lea.sflag [#allocation7], %s291
        %s293 = sand.u32 %s108, 1
        %s294 = smul.addr %s293, 512
        %s295 = scalar_lea.vmem [#allocation8], %s294
        // Predicated region
        $region49: #{tpu_custom_call.1} parent=39 // pred_check
          %p296 = pneg %p121
        $region50: #{tpu_custom_call.1} parent=39 // pred_check_branch
          %298 = sbr.rel (%p296) target = $region52
        $region51: #{tpu_custom_call.1} parent=39 // pred_region
          %299 = dma.done %s292, 8192
        $region52: #{tpu_custom_call.1} parent=39 // pred_fallthru
          _
        // Predicated region
        $region53: #{tpu_custom_call.1} parent=39 // pred_check
          %p300 = pneg %p142
        $region54: #{tpu_custom_call.1} parent=39 // pred_check_branch
          %302 = sbr.rel (%p300) target = $region56
        $region55: #{tpu_custom_call.1} parent=39 // pred_region
          %303 = dma.done [#allocation10], 8192
        $region56: #{tpu_custom_call.1} parent=39 // pred_fallthru
          _
        %p304 = pneg %p43
        %p305 = pneg %p40
        %s306 = sand.u32 %s56, 1
        %s307 = scalar_lea.sflag [#allocation4], %s306
        %s308 = sand.u32 %s56, 1
        %s309 = smul.addr %s308, 512
        %s310 = scalar_lea.vmem [#allocation3], %s309
        %p311 = pneg %p69
        %p312 = pneg %p66
        %s313 = sand.u32 %s27, 1
        %s314 = scalar_lea.sflag [#allocation7], %s313
        %s315 = sand.u32 %s82, 1
        %s316 = smul.addr %s315, 512
        %s317 = scalar_lea.vmem [#allocation6], %s316
        %p318 = pneg %p95
        %p319 = pneg %p92
        %s320 = sand.u32 %s27, 1
        %s321 = scalar_lea.sflag [#allocation7], %s320
        %s322 = sand.u32 %s108, 1
        %s323 = smul.addr %s322, 512
        %s324 = scalar_lea.vmem [#allocation8], %s323
        %p325 = pneg %p121
        %p326 = pneg %p118
        %p327 = pneg %p142
        %p328 = pneg %p139
        %p329 = pneg %p168
        %p330 = pneg %p165
        %s331 = sand.u32 %s155, 1
        %s332 = scalar_lea.sflag [#allocation5], %s331
        %s333 = sand.u32 %s155, 1
        %s334 = smul.addr %s333, 512
        %s335 = scalar_lea.vmem [#allocation11], %s334
        %v336 = vld [vmem:[%s295] sm:$0xff]
        %v337 = vld [vmem:[%s295 + $0x8] sm:$0xff]
        %v338 = vld [vmem:[%s295 + $0x10] sm:$0xff]
        %v339 = vld [vmem:[%s295 + $0x18] sm:$0xff]
        %v340 = vld [vmem:[%s295 + $0x20] sm:$0xff]
        %v341 = vld [vmem:[%s295 + $0x28] sm:$0xff]
        %v342 = vld [vmem:[%s295 + $0x30] sm:$0xff]
        %v343 = vld [vmem:[%s295 + $0x38] sm:$0xff]
        %v344 = vld [vmem:[%s295 + $0x40] sm:$0xff]
        %v345 = vld [vmem:[%s295 + $0x48] sm:$0xff]
        %v346 = vld [vmem:[%s295 + $0x50] sm:$0xff]
        %v347 = vld [vmem:[%s295 + $0x58] sm:$0xff]
        %v348 = vld [vmem:[%s295 + $0x60] sm:$0xff]
        %v349 = vld [vmem:[%s295 + $0x68] sm:$0xff]
        %v350 = vld [vmem:[%s295 + $0x70] sm:$0xff]
        %v351 = vld [vmem:[%s295 + $0x78] sm:$0xff]
        %v352 = vld [vmem:[%s295 + $0x80] sm:$0xff]
        %v353 = vld [vmem:[%s295 + $0x88] sm:$0xff]
        %v354 = vld [vmem:[%s295 + $0x90] sm:$0xff]
        %v355 = vld [vmem:[%s295 + $0x98] sm:$0xff]
        %v356 = vld [vmem:[%s295 + $0xa0] sm:$0xff]
        %v357 = vld [vmem:[%s295 + $0xa8] sm:$0xff]
        %v358 = vld [vmem:[%s295 + $0xb0] sm:$0xff]
        %v359 = vld [vmem:[%s295 + $0xb8] sm:$0xff]
        %v360 = vld [vmem:[%s295 + $0xc0] sm:$0xff]
        %v361 = vld [vmem:[%s295 + $0xc8] sm:$0xff]
        %v362 = vld [vmem:[%s295 + $0xd0] sm:$0xff]
        %v363 = vld [vmem:[%s295 + $0xd8] sm:$0xff]
        %v364 = vld [vmem:[%s295 + $0xe0] sm:$0xff]
        %v365 = vld [vmem:[%s295 + $0xe8] sm:$0xff]
        %v366 = vld [vmem:[%s295 + $0xf0] sm:$0xff]
        %v367 = vld [vmem:[%s295 + $0xf8] sm:$0xff]
        %v368 = vld [vmem:[%s295 + $0x100] sm:$0xff]
        %v369 = vld [vmem:[%s295 + $0x108] sm:$0xff]
        %v370 = vld [vmem:[%s295 + $0x110] sm:$0xff]
        %v371 = vld [vmem:[%s295 + $0x118] sm:$0xff]
        %v372 = vld [vmem:[%s295 + $0x120] sm:$0xff]
        %v373 = vld [vmem:[%s295 + $0x128] sm:$0xff]
        %v374 = vld [vmem:[%s295 + $0x130] sm:$0xff]
        %v375 = vld [vmem:[%s295 + $0x138] sm:$0xff]
        %v376 = vld [vmem:[%s295 + $0x140] sm:$0xff]
        %v377 = vld [vmem:[%s295 + $0x148] sm:$0xff]
        %v378 = vld [vmem:[%s295 + $0x150] sm:$0xff]
        %v379 = vld [vmem:[%s295 + $0x158] sm:$0xff]
        %v380 = vld [vmem:[%s295 + $0x160] sm:$0xff]
        %v381 = vld [vmem:[%s295 + $0x168] sm:$0xff]
        %v382 = vld [vmem:[%s295 + $0x170] sm:$0xff]
        %v383 = vld [vmem:[%s295 + $0x178] sm:$0xff]
        %v384 = vld [vmem:[%s295 + $0x180] sm:$0xff]
        %v385 = vld [vmem:[%s295 + $0x188] sm:$0xff]
        %v386 = vld [vmem:[%s295 + $0x190] sm:$0xff]
        %v387 = vld [vmem:[%s295 + $0x198] sm:$0xff]
        %v388 = vld [vmem:[%s295 + $0x1a0] sm:$0xff]
        %v389 = vld [vmem:[%s295 + $0x1a8] sm:$0xff]
        %v390 = vld [vmem:[%s295 + $0x1b0] sm:$0xff]
        %v391 = vld [vmem:[%s295 + $0x1b8] sm:$0xff]
        %v392 = vld [vmem:[%s295 + $0x1c0] sm:$0xff]
        %v393 = vld [vmem:[%s295 + $0x1c8] sm:$0xff]
        %v394 = vld [vmem:[%s295 + $0x1d0] sm:$0xff]
        %v395 = vld [vmem:[%s295 + $0x1d8] sm:$0xff]
        %v396 = vld [vmem:[%s295 + $0x1e0] sm:$0xff]
        %v397 = vld [vmem:[%s295 + $0x1e8] sm:$0xff]
        %v398 = vld [vmem:[%s295 + $0x1f0] sm:$0xff]
        %v399 = vld [vmem:[%s295 + $0x1f8] sm:$0xff]
        %v400 = vld [vmem:[#allocation9] sm:$0xff]
        %v401 = vld [vmem:[#allocation9 + $0x8] sm:$0xff]
        %v402 = vld [vmem:[#allocation9 + $0x10] sm:$0xff]
        %v403 = vld [vmem:[#allocation9 + $0x18] sm:$0xff]
        %v404 = vld [vmem:[#allocation9 + $0x20] sm:$0xff]
        %v405 = vld [vmem:[#allocation9 + $0x28] sm:$0xff]
        %v406 = vld [vmem:[#allocation9 + $0x30] sm:$0xff]
        %v407 = vld [vmem:[#allocation9 + $0x38] sm:$0xff]
        %v408 = vld [vmem:[#allocation9 + $0x40] sm:$0xff]
        %v409 = vld [vmem:[#allocation9 + $0x48] sm:$0xff]
        %v410 = vld [vmem:[#allocation9 + $0x50] sm:$0xff]
        %v411 = vld [vmem:[#allocation9 + $0x58] sm:$0xff]
        %v412 = vld [vmem:[#allocation9 + $0x60] sm:$0xff]
        %v413 = vld [vmem:[#allocation9 + $0x68] sm:$0xff]
        %v414 = vld [vmem:[#allocation9 + $0x70] sm:$0xff]
        %v415 = vld [vmem:[#allocation9 + $0x78] sm:$0xff]
        %v416 = vld [vmem:[#allocation9 + $0x80] sm:$0xff]
        %v417 = vld [vmem:[#allocation9 + $0x88] sm:$0xff]
        %v418 = vld [vmem:[#allocation9 + $0x90] sm:$0xff]
        %v419 = vld [vmem:[#allocation9 + $0x98] sm:$0xff]
        %v420 = vld [vmem:[#allocation9 + $0xa0] sm:$0xff]
        %v421 = vld [vmem:[#allocation9 + $0xa8] sm:$0xff]
        %v422 = vld [vmem:[#allocation9 + $0xb0] sm:$0xff]
        %v423 = vld [vmem:[#allocation9 + $0xb8] sm:$0xff]
        %v424 = vld [vmem:[#allocation9 + $0xc0] sm:$0xff]
        %v425 = vld [vmem:[#allocation9 + $0xc8] sm:$0xff]
        %v426 = vld [vmem:[#allocation9 + $0xd0] sm:$0xff]
        %v427 = vld [vmem:[#allocation9 + $0xd8] sm:$0xff]
        %v428 = vld [vmem:[#allocation9 + $0xe0] sm:$0xff]
        %v429 = vld [vmem:[#allocation9 + $0xe8] sm:$0xff]
        %v430 = vld [vmem:[#allocation9 + $0xf0] sm:$0xff]
        %v431 = vld [vmem:[#allocation9 + $0xf8] sm:$0xff]
        %v432 = vld [vmem:[#allocation9 + $0x100] sm:$0xff]
        %v433 = vld [vmem:[#allocation9 + $0x108] sm:$0xff]
        %v434 = vld [vmem:[#allocation9 + $0x110] sm:$0xff]
        %v435 = vld [vmem:[#allocation9 + $0x118] sm:$0xff]
        %v436 = vld [vmem:[#allocation9 + $0x120] sm:$0xff]
        %v437 = vld [vmem:[#allocation9 + $0x128] sm:$0xff]
        %v438 = vld [vmem:[#allocation9 + $0x130] sm:$0xff]
        %v439 = vld [vmem:[#allocation9 + $0x138] sm:$0xff]
        %v440 = vld [vmem:[#allocation9 + $0x140] sm:$0xff]
        %v441 = vld [vmem:[#allocation9 + $0x148] sm:$0xff]
        %v442 = vld [vmem:[#allocation9 + $0x150] sm:$0xff]
        %v443 = vld [vmem:[#allocation9 + $0x158] sm:$0xff]
        %v444 = vld [vmem:[#allocation9 + $0x160] sm:$0xff]
        %v445 = vld [vmem:[#allocation9 + $0x168] sm:$0xff]
        %v446 = vld [vmem:[#allocation9 + $0x170] sm:$0xff]
        %v447 = vld [vmem:[#allocation9 + $0x178] sm:$0xff]
        %v448 = vld [vmem:[#allocation9 + $0x180] sm:$0xff]
        %v449 = vld [vmem:[#allocation9 + $0x188] sm:$0xff]
        %v450 = vld [vmem:[#allocation9 + $0x190] sm:$0xff]
        %v451 = vld [vmem:[#allocation9 + $0x198] sm:$0xff]
        %v452 = vld [vmem:[#allocation9 + $0x1a0] sm:$0xff]
        %v453 = vld [vmem:[#allocation9 + $0x1a8] sm:$0xff]
        %v454 = vld [vmem:[#allocation9 + $0x1b0] sm:$0xff]
        %v455 = vld [vmem:[#allocation9 + $0x1b8] sm:$0xff]
        %v456 = vld [vmem:[#allocation9 + $0x1c0] sm:$0xff]
        %v457 = vld [vmem:[#allocation9 + $0x1c8] sm:$0xff]
        %v458 = vld [vmem:[#allocation9 + $0x1d0] sm:$0xff]
        %v459 = vld [vmem:[#allocation9 + $0x1d8] sm:$0xff]
        %v460 = vld [vmem:[#allocation9 + $0x1e0] sm:$0xff]
        %v461 = vld [vmem:[#allocation9 + $0x1e8] sm:$0xff]
        %v462 = vld [vmem:[#allocation9 + $0x1f0] sm:$0xff]
        %v463 = vld [vmem:[#allocation9 + $0x1f8] sm:$0xff]
        %464 = vmatprep.subr.mxu0 %v337
        %465 = vmatpush1.msra.mxu0 %v336
        %466 = vmatprep.subr.mxu0 %v339
        %467 = vmatpush1.msra.mxu0 %v338
        %468 = vmatprep.subr.mxu0 %v341
        %469 = vmatpush1.msra.mxu0 %v340
        %470 = vmatprep.subr.mxu0 %v343
        %471 = vmatpush1.msra.mxu0 %v342
        %472 = vmatprep.subr.mxu0 %v345
        %473 = vmatpush1.msra.mxu0 %v344
        %474 = vmatprep.subr.mxu0 %v347
        %475 = vmatpush1.msra.mxu0 %v346
        %476 = vmatprep.subr.mxu0 %v349
        %477 = vmatpush1.msra.mxu0 %v348
        %478 = vmatprep.subr.mxu0 %v351
        %479 = vmatpush1.msra.mxu0 %v350
        %480 = vmatprep.subr.mxu0 %v353
        %481 = vmatpush1.msra.mxu0 %v352
        %482 = vmatprep.subr.mxu0 %v355
        %483 = vmatpush1.msra.mxu0 %v354
        %484 = vmatprep.subr.mxu0 %v357
        %485 = vmatpush1.msra.mxu0 %v356
        %486 = vmatprep.subr.mxu0 %v359
        %487 = vmatpush1.msra.mxu0 %v358
        %488 = vmatprep.subr.mxu0 %v361
        %489 = vmatpush1.msra.mxu0 %v360
        %490 = vmatprep.subr.mxu0 %v363
        %491 = vmatpush1.msra.mxu0 %v362
        %492 = vmatprep.subr.mxu0 %v365
        %493 = vmatpush1.msra.mxu0 %v364
        %494 = vmatprep.subr.mxu0 %v367
        %495 = vmatpush1.msra.mxu0 %v366
        %496 = vmatprep.subr.mxu0 %v369
        %497 = vmatpush1.msra.mxu0 %v368
        %498 = vmatprep.subr.mxu0 %v371
        %499 = vmatpush1.msra.mxu0 %v370
        %500 = vmatprep.subr.mxu0 %v373
        %501 = vmatpush1.msra.mxu0 %v372
        %502 = vmatprep.subr.mxu0 %v375
        %503 = vmatpush1.msra.mxu0 %v374
        %504 = vmatprep.subr.mxu0 %v377
        %505 = vmatpush1.msra.mxu0 %v376
        %506 = vmatprep.subr.mxu0 %v379
        %507 = vmatpush1.msra.mxu0 %v378
        %508 = vmatprep.subr.mxu0 %v381
        %509 = vmatpush1.msra.mxu0 %v380
        %510 = vmatprep.subr.mxu0 %v383
        %511 = vmatpush1.msra.mxu0 %v382
        %512 = vmatprep.subr.mxu0 %v385
        %513 = vmatpush1.msra.mxu0 %v384
        %514 = vmatprep.subr.mxu0 %v387
        %515 = vmatpush1.msra.mxu0 %v386
        %516 = vmatprep.subr.mxu0 %v389
        %517 = vmatpush1.msra.mxu0 %v388
        %518 = vmatprep.subr.mxu0 %v391
        %519 = vmatpush1.msra.mxu0 %v390
        %520 = vmatprep.subr.mxu0 %v393
        %521 = vmatpush1.msra.mxu0 %v392
        %522 = vmatprep.subr.mxu0 %v395
        %523 = vmatpush1.msra.mxu0 %v394
        %524 = vmatprep.subr.mxu0 %v397
        %525 = vmatpush1.msra.mxu0 %v396
        %526 = vmatprep.subr.mxu0 %v399
        %527 = vmatpush1.msra.mxu0 %v398
        %528 = vmatprep.mubr.f32.mxu0 %v401
        %529 = vmatmul.mubr.f32.gmra.mrb[0].mxu0 %v400
        %v530 = vpop.f32.mrb[0].mxu0
        %v531 = vadd.f32 0.0, %v530
        %v532 = vpop.f32.mrb[0].mxu0
        %v533 = vadd.f32 0.0, %v532
        %534 = vmatprep.mubr.f32.mxu0 %v403
        %535 = vmatmul.mubr.f32.gmra.mrb[0].mxu0 %v402
        %v536 = vpop.f32.mrb[0].mxu0
        %v537 = vadd.f32 0.0, %v536
        %v538 = vpop.f32.mrb[0].mxu0
        %v539 = vadd.f32 0.0, %v538
        %540 = vmatprep.mubr.f32.mxu0 %v405
        %541 = vmatmul.mubr.f32.gmra.mrb[0].mxu0 %v404
        %v542 = vpop.f32.mrb[0].mxu0
        %v543 = vadd.f32 0.0, %v542
        %v544 = vpop.f32.mrb[0].mxu0
        %v545 = vadd.f32 0.0, %v544
        %546 = vmatprep.mubr.f32.mxu0 %v407
        %547 = vmatmul.mubr.f32.gmra.mrb[0].mxu0 %v406
        %v548 = vpop.f32.mrb[0].mxu0
        %v549 = vadd.f32 0.0, %v548
        %v550 = vpop.f32.mrb[0].mxu0
        %v551 = vadd.f32 0.0, %v550
        %552 = vmatprep.mubr.f32.mxu0 %v409
        %553 = vmatmul.mubr.f32.gmra.mrb[0].mxu0 %v408
        %v554 = vpop.f32.mrb[0].mxu0
        %v555 = vadd.f32 0.0, %v554
        %v556 = vpop.f32.mrb[0].mxu0
        %v557 = vadd.f32 0.0, %v556
        %558 = vmatprep.mubr.f32.mxu0 %v411
        %559 = vmatmul.mubr.f32.gmra.mrb[0].mxu0 %v410
        %v560 = vpop.f32.mrb[0].mxu0
        %v561 = vadd.f32 0.0, %v560
        %v562 = vpop.f32.mrb[0].mxu0
        %v563 = vadd.f32 0.0, %v562
        %564 = vmatprep.mubr.f32.mxu0 %v413
        %565 = vmatmul.mubr.f32.gmra.mrb[0].mxu0 %v412
        %v566 = vpop.f32.mrb[0].mxu0
        %v567 = vadd.f32 0.0, %v566
        %v568 = vpop.f32.mrb[0].mxu0
        %v569 = vadd.f32 0.0, %v568
        %570 = vmatprep.mubr.f32.mxu0 %v415
        %571 = vmatmul.mubr.f32.gmra.mrb[0].mxu0 %v414
        %v572 = vpop.f32.mrb[0].mxu0
        %v573 = vadd.f32 0.0, %v572
        %v574 = vpop.f32.mrb[0].mxu0
        %v575 = vadd.f32 0.0, %v574
        %576 = vmatprep.mubr.f32.mxu0 %v417
        %577 = vmatmul.mubr.f32.gmra.mrb[0].mxu0 %v416
        %v578 = vpop.f32.mrb[0].mxu0
        %v579 = vadd.f32 0.0, %v578
        %v580 = vpop.f32.mrb[0].mxu0
        %v581 = vadd.f32 0.0, %v580
        %582 = vmatprep.mubr.f32.mxu0 %v419
        %583 = vmatmul.mubr.f32.gmra.mrb[0].mxu0 %v418
        %v584 = vpop.f32.mrb[0].mxu0
        %v585 = vadd.f32 0.0, %v584
        %v586 = vpop.f32.mrb[0].mxu0
        %v587 = vadd.f32 0.0, %v586
        %588 = vmatprep.mubr.f32.mxu0 %v421
        %589 = vmatmul.mubr.f32.gmra.mrb[0].mxu0 %v420
        %v590 = vpop.f32.mrb[0].mxu0
        %v591 = vadd.f32 0.0, %v590
        %v592 = vpop.f32.mrb[0].mxu0
        %v593 = vadd.f32 0.0, %v592
        %594 = vmatprep.mubr.f32.mxu0 %v423
        %595 = vmatmul.mubr.f32.gmra.mrb[0].mxu0 %v422
        %v596 = vpop.f32.mrb[0].mxu0
        %v597 = vadd.f32 0.0, %v596
        %v598 = vpop.f32.mrb[0].mxu0
        %v599 = vadd.f32 0.0, %v598
        %600 = vmatprep.mubr.f32.mxu0 %v425
        %601 = vmatmul.mubr.f32.gmra.mrb[0].mxu0 %v424
        %v602 = vpop.f32.mrb[0].mxu0
        %v603 = vadd.f32 0.0, %v602
        %v604 = vpop.f32.mrb[0].mxu0
        %v605 = vadd.f32 0.0, %v604
        %606 = vmatprep.mubr.f32.mxu0 %v427
        %607 = vmatmul.mubr.f32.gmra.mrb[0].mxu0 %v426
        %v608 = vpop.f32.mrb[0].mxu0
        %v609 = vadd.f32 0.0, %v608
        %v610 = vpop.f32.mrb[0].mxu0
        %v611 = vadd.f32 0.0, %v610
        %612 = vmatprep.mubr.f32.mxu0 %v429
        %613 = vmatmul.mubr.f32.gmra.mrb[0].mxu0 %v428
        %v614 = vpop.f32.mrb[0].mxu0
        %v615 = vadd.f32 0.0, %v614
        %v616 = vpop.f32.mrb[0].mxu0
        %v617 = vadd.f32 0.0, %v616
        %618 = vmatprep.mubr.f32.mxu0 %v431
        %619 = vmatmul.mubr.f32.gmra.mrb[0].mxu0 %v430
        %v620 = vpop.f32.mrb[0].mxu0
        %v621 = vadd.f32 0.0, %v620
        %v622 = vpop.f32.mrb[0].mxu0
        %v623 = vadd.f32 0.0, %v622
        %624 = vmatprep.mubr.f32.mxu0 %v433
        %625 = vmatmul.mubr.f32.gmra.mrb[0].mxu0 %v432
        %v626 = vpop.f32.mrb[0].mxu0
        %v627 = vadd.f32 0.0, %v626
        %v628 = vpop.f32.mrb[0].mxu0
        %v629 = vadd.f32 0.0, %v628
        %630 = vmatprep.mubr.f32.mxu0 %v435
        %631 = vmatmul.mubr.f32.gmra.mrb[0].mxu0 %v434
        %v632 = vpop.f32.mrb[0].mxu0
        %v633 = vadd.f32 0.0, %v632
        %v634 = vpop.f32.mrb[0].mxu0
        %v635 = vadd.f32 0.0, %v634
        %636 = vmatprep.mubr.f32.mxu0 %v437
        %637 = vmatmul.mubr.f32.gmra.mrb[0].mxu0 %v436
        %v638 = vpop.f32.mrb[0].mxu0
        %v639 = vadd.f32 0.0, %v638
        %v640 = vpop.f32.mrb[0].mxu0
        %v641 = vadd.f32 0.0, %v640
        %642 = vmatprep.mubr.f32.mxu0 %v439
        %643 = vmatmul.mubr.f32.gmra.mrb[0].mxu0 %v438
        %v644 = vpop.f32.mrb[0].mxu0
        %v645 = vadd.f32 0.0, %v644
        %v646 = vpop.f32.mrb[0].mxu0
        %v647 = vadd.f32 0.0, %v646
        %648 = vmatprep.mubr.f32.mxu0 %v441
        %649 = vmatmul.mubr.f32.gmra.mrb[0].mxu0 %v440
        %v650 = vpop.f32.mrb[0].mxu0
        %v651 = vadd.f32 0.0, %v650
        %v652 = vpop.f32.mrb[0].mxu0
        %v653 = vadd.f32 0.0, %v652
        %654 = vmatprep.mubr.f32.mxu0 %v443
        %655 = vmatmul.mubr.f32.gmra.mrb[0].mxu0 %v442
        %v656 = vpop.f32.mrb[0].mxu0
        %v657 = vadd.f32 0.0, %v656
        %v658 = vpop.f32.mrb[0].mxu0
        %v659 = vadd.f32 0.0, %v658
        %660 = vmatprep.mubr.f32.mxu0 %v445
        %661 = vmatmul.mubr.f32.gmra.mrb[0].mxu0 %v444
        %v662 = vpop.f32.mrb[0].mxu0
        %v663 = vadd.f32 0.0, %v662
        %v664 = vpop.f32.mrb[0].mxu0
        %v665 = vadd.f32 0.0, %v664
        %666 = vmatprep.mubr.f32.mxu0 %v447
        %667 = vmatmul.mubr.f32.gmra.mrb[0].mxu0 %v446
        %v668 = vpop.f32.mrb[0].mxu0
        %v669 = vadd.f32 0.0, %v668
        %v670 = vpop.f32.mrb[0].mxu0
        %v671 = vadd.f32 0.0, %v670
        %672 = vmatprep.mubr.f32.mxu0 %v449
        %673 = vmatmul.mubr.f32.gmra.mrb[0].mxu0 %v448
        %v674 = vpop.f32.mrb[0].mxu0
        %v675 = vadd.f32 0.0, %v674
        %v676 = vpop.f32.mrb[0].mxu0
        %v677 = vadd.f32 0.0, %v676
        %678 = vmatprep.mubr.f32.mxu0 %v451
        %679 = vmatmul.mubr.f32.gmra.mrb[0].mxu0 %v450
        %v680 = vpop.f32.mrb[0].mxu0
        %v681 = vadd.f32 0.0, %v680
        %v682 = vpop.f32.mrb[0].mxu0
        %v683 = vadd.f32 0.0, %v682
        %684 = vmatprep.mubr.f32.mxu0 %v453
        %685 = vmatmul.mubr.f32.gmra.mrb[0].mxu0 %v452
        %v686 = vpop.f32.mrb[0].mxu0
        %v687 = vadd.f32 0.0, %v686
        %v688 = vpop.f32.mrb[0].mxu0
        %v689 = vadd.f32 0.0, %v688
        %690 = vmatprep.mubr.f32.mxu0 %v455
        %691 = vmatmul.mubr.f32.gmra.mrb[0].mxu0 %v454
        %v692 = vpop.f32.mrb[0].mxu0
        %v693 = vadd.f32 0.0, %v692
        %v694 = vpop.f32.mrb[0].mxu0
        %v695 = vadd.f32 0.0, %v694
        %696 = vmatprep.mubr.f32.mxu0 %v457
        %697 = vmatmul.mubr.f32.gmra.mrb[0].mxu0 %v456
        %v698 = vpop.f32.mrb[0].mxu0
        %v699 = vadd.f32 0.0, %v698
        %v700 = vpop.f32.mrb[0].mxu0
        %v701 = vadd.f32 0.0, %v700
        %702 = vmatprep.mubr.f32.mxu0 %v459
        %703 = vmatmul.mubr.f32.gmra.mrb[0].mxu0 %v458
        %v704 = vpop.f32.mrb[0].mxu0
        %v705 = vadd.f32 0.0, %v704
        %v706 = vpop.f32.mrb[0].mxu0
        %v707 = vadd.f32 0.0, %v706
        %708 = vmatprep.mubr.f32.mxu0 %v461
        %709 = vmatmul.mubr.f32.gmra.mrb[0].mxu0 %v460
        %v710 = vpop.f32.mrb[0].mxu0
        %v711 = vadd.f32 0.0, %v710
        %v712 = vpop.f32.mrb[0].mxu0
        %v713 = vadd.f32 0.0, %v712
        %714 = vmatprep.mubr.f32.mxu0 %v463
        %715 = vmatmul.mubr.f32.gmra.mrb[0].mxu0 %v462
        %v716 = vpop.f32.mrb[0].mxu0
        %v717 = vadd.f32 0.0, %v716
        %v718 = vpop.f32.mrb[0].mxu0
        %v719 = vadd.f32 0.0, %v718
        %720 = vdwg.mxu0
        %s721 = sld [smem:[#allocation2]]
        %v722 = vld [vmem:[%s277] sm:$0xff]
        %v723 = vld [vmem:[%s277 + $0x8] sm:$0xff]
        %v724 = vld [vmem:[%s277 + $0x10] sm:$0xff]
        %v725 = vld [vmem:[%s277 + $0x18] sm:$0xff]
        %v726 = vld [vmem:[%s277 + $0x20] sm:$0xff]
        %v727 = vld [vmem:[%s277 + $0x28] sm:$0xff]
        %v728 = vld [vmem:[%s277 + $0x30] sm:$0xff]
        %v729 = vld [vmem:[%s277 + $0x38] sm:$0xff]
        %v730 = vld [vmem:[%s277 + $0x40] sm:$0xff]
        %v731 = vld [vmem:[%s277 + $0x48] sm:$0xff]
        %v732 = vld [vmem:[%s277 + $0x50] sm:$0xff]
        %v733 = vld [vmem:[%s277 + $0x58] sm:$0xff]
        %v734 = vld [vmem:[%s277 + $0x60] sm:$0xff]
        %v735 = vld [vmem:[%s277 + $0x68] sm:$0xff]
        %v736 = vld [vmem:[%s277 + $0x70] sm:$0xff]
        %v737 = vld [vmem:[%s277 + $0x78] sm:$0xff]
        %v738 = vld [vmem:[%s277 + $0x80] sm:$0xff]
        %v739 = vld [vmem:[%s277 + $0x88] sm:$0xff]
        %v740 = vld [vmem:[%s277 + $0x90] sm:$0xff]
        %v741 = vld [vmem:[%s277 + $0x98] sm:$0xff]
        %v742 = vld [vmem:[%s277 + $0xa0] sm:$0xff]
        %v743 = vld [vmem:[%s277 + $0xa8] sm:$0xff]
        %v744 = vld [vmem:[%s277 + $0xb0] sm:$0xff]
        %v745 = vld [vmem:[%s277 + $0xb8] sm:$0xff]
        %v746 = vld [vmem:[%s277 + $0xc0] sm:$0xff]
        %v747 = vld [vmem:[%s277 + $0xc8] sm:$0xff]
        %v748 = vld [vmem:[%s277 + $0xd0] sm:$0xff]
        %v749 = vld [vmem:[%s277 + $0xd8] sm:$0xff]
        %v750 = vld [vmem:[%s277 + $0xe0] sm:$0xff]
        %v751 = vld [vmem:[%s277 + $0xe8] sm:$0xff]
        %v752 = vld [vmem:[%s277 + $0xf0] sm:$0xff]
        %v753 = vld [vmem:[%s277 + $0xf8] sm:$0xff]
        %v754 = vld [vmem:[%s277 + $0x100] sm:$0xff]
        %v755 = vld [vmem:[%s277 + $0x108] sm:$0xff]
        %v756 = vld [vmem:[%s277 + $0x110] sm:$0xff]
        %v757 = vld [vmem:[%s277 + $0x118] sm:$0xff]
        %v758 = vld [vmem:[%s277 + $0x120] sm:$0xff]
        %v759 = vld [vmem:[%s277 + $0x128] sm:$0xff]
        %v760 = vld [vmem:[%s277 + $0x130] sm:$0xff]
        %v761 = vld [vmem:[%s277 + $0x138] sm:$0xff]
        %v762 = vld [vmem:[%s277 + $0x140] sm:$0xff]
        %v763 = vld [vmem:[%s277 + $0x148] sm:$0xff]
        %v764 = vld [vmem:[%s277 + $0x150] sm:$0xff]
        %v765 = vld [vmem:[%s277 + $0x158] sm:$0xff]
        %v766 = vld [vmem:[%s277 + $0x160] sm:$0xff]
        %v767 = vld [vmem:[%s277 + $0x168] sm:$0xff]
        %v768 = vld [vmem:[%s277 + $0x170] sm:$0xff]
        %v769 = vld [vmem:[%s277 + $0x178] sm:$0xff]
        %v770 = vld [vmem:[%s277 + $0x180] sm:$0xff]
        %v771 = vld [vmem:[%s277 + $0x188] sm:$0xff]
        %v772 = vld [vmem:[%s277 + $0x190] sm:$0xff]
        %v773 = vld [vmem:[%s277 + $0x198] sm:$0xff]
        %v774 = vld [vmem:[%s277 + $0x1a0] sm:$0xff]
        %v775 = vld [vmem:[%s277 + $0x1a8] sm:$0xff]
        %v776 = vld [vmem:[%s277 + $0x1b0] sm:$0xff]
        %v777 = vld [vmem:[%s277 + $0x1b8] sm:$0xff]
        %v778 = vld [vmem:[%s277 + $0x1c0] sm:$0xff]
        %v779 = vld [vmem:[%s277 + $0x1c8] sm:$0xff]
        %v780 = vld [vmem:[%s277 + $0x1d0] sm:$0xff]
        %v781 = vld [vmem:[%s277 + $0x1d8] sm:$0xff]
        %v782 = vld [vmem:[%s277 + $0x1e0] sm:$0xff]
        %v783 = vld [vmem:[%s277 + $0x1e8] sm:$0xff]
        %v784 = vld [vmem:[%s277 + $0x1f0] sm:$0xff]
        %v785 = vld [vmem:[%s277 + $0x1f8] sm:$0xff]
        %v786 = vmul.f32 %v722, 0.088388346
        %v787 = vmul.f32 %v723, 0.088388346
        %v788 = vmul.f32 %v724, 0.088388346
        %v789 = vmul.f32 %v725, 0.088388346
        %v790 = vmul.f32 %v726, 0.088388346
        %v791 = vmul.f32 %v727, 0.088388346
        %v792 = vmul.f32 %v728, 0.088388346
        %v793 = vmul.f32 %v729, 0.088388346
        %v794 = vmul.f32 %v730, 0.088388346
        %v795 = vmul.f32 %v731, 0.088388346
        %v796 = vmul.f32 %v732, 0.088388346
        %v797 = vmul.f32 %v733, 0.088388346
        %v798 = vmul.f32 %v734, 0.088388346
        %v799 = vmul.f32 %v735, 0.088388346
        %v800 = vmul.f32 %v736, 0.088388346
        %v801 = vmul.f32 %v737, 0.088388346
        %v802 = vmul.f32 %v738, 0.088388346
        %v803 = vmul.f32 %v739, 0.088388346
        %v804 = vmul.f32 %v740, 0.088388346
        %v805 = vmul.f32 %v741, 0.088388346
        %v806 = vmul.f32 %v742, 0.088388346
        %v807 = vmul.f32 %v743, 0.088388346
        %v808 = vmul.f32 %v744, 0.088388346
        %v809 = vmul.f32 %v745, 0.088388346
        %v810 = vmul.f32 %v746, 0.088388346
        %v811 = vmul.f32 %v747, 0.088388346
        %v812 = vmul.f32 %v748, 0.088388346
        %v813 = vmul.f32 %v749, 0.088388346
        %v814 = vmul.f32 %v750, 0.088388346
        %v815 = vmul.f32 %v751, 0.088388346
        %v816 = vmul.f32 %v752, 0.088388346
        %v817 = vmul.f32 %v753, 0.088388346
        %v818 = vmul.f32 %v754, 0.088388346
        %v819 = vmul.f32 %v755, 0.088388346
        %v820 = vmul.f32 %v756, 0.088388346
        %v821 = vmul.f32 %v757, 0.088388346
        %v822 = vmul.f32 %v758, 0.088388346
        %v823 = vmul.f32 %v759, 0.088388346
        %v824 = vmul.f32 %v760, 0.088388346
        %v825 = vmul.f32 %v761, 0.088388346
        %v826 = vmul.f32 %v762, 0.088388346
        %v827 = vmul.f32 %v763, 0.088388346
        %v828 = vmul.f32 %v764, 0.088388346
        %v829 = vmul.f32 %v765, 0.088388346
        %v830 = vmul.f32 %v766, 0.088388346
        %v831 = vmul.f32 %v767, 0.088388346
        %v832 = vmul.f32 %v768, 0.088388346
        %v833 = vmul.f32 %v769, 0.088388346
        %v834 = vmul.f32 %v770, 0.088388346
        %v835 = vmul.f32 %v771, 0.088388346
        %v836 = vmul.f32 %v772, 0.088388346
        %v837 = vmul.f32 %v773, 0.088388346
        %v838 = vmul.f32 %v774, 0.088388346
        %v839 = vmul.f32 %v775, 0.088388346
        %v840 = vmul.f32 %v776, 0.088388346
        %v841 = vmul.f32 %v777, 0.088388346
        %v842 = vmul.f32 %v778, 0.088388346
        %v843 = vmul.f32 %v779, 0.088388346
        %v844 = vmul.f32 %v780, 0.088388346
        %v845 = vmul.f32 %v781, 0.088388346
        %v846 = vmul.f32 %v782, 0.088388346
        %v847 = vmul.f32 %v783, 0.088388346
        %v848 = vmul.f32 %v784, 0.088388346
        %v849 = vmul.f32 %v785, 0.088388346
        %v850 = vld [vmem:[%s286] sm:$0xff]
        %v851 = vld [vmem:[%s286 + $0x8] sm:$0xff]
        %v852 = vld [vmem:[%s286 + $0x10] sm:$0xff]
        %v853 = vld [vmem:[%s286 + $0x18] sm:$0xff]
        %v854 = vld [vmem:[%s286 + $0x20] sm:$0xff]
        %v855 = vld [vmem:[%s286 + $0x28] sm:$0xff]
        %v856 = vld [vmem:[%s286 + $0x30] sm:$0xff]
        %v857 = vld [vmem:[%s286 + $0x38] sm:$0xff]
        %v858 = vld [vmem:[%s286 + $0x40] sm:$0xff]
        %v859 = vld [vmem:[%s286 + $0x48] sm:$0xff]
        %v860 = vld [vmem:[%s286 + $0x50] sm:$0xff]
        %v861 = vld [vmem:[%s286 + $0x58] sm:$0xff]
        %v862 = vld [vmem:[%s286 + $0x60] sm:$0xff]
        %v863 = vld [vmem:[%s286 + $0x68] sm:$0xff]
        %v864 = vld [vmem:[%s286 + $0x70] sm:$0xff]
        %v865 = vld [vmem:[%s286 + $0x78] sm:$0xff]
        %v866 = vld [vmem:[%s286 + $0x80] sm:$0xff]
        %v867 = vld [vmem:[%s286 + $0x88] sm:$0xff]
        %v868 = vld [vmem:[%s286 + $0x90] sm:$0xff]
        %v869 = vld [vmem:[%s286 + $0x98] sm:$0xff]
        %v870 = vld [vmem:[%s286 + $0xa0] sm:$0xff]
        %v871 = vld [vmem:[%s286 + $0xa8] sm:$0xff]
        %v872 = vld [vmem:[%s286 + $0xb0] sm:$0xff]
        %v873 = vld [vmem:[%s286 + $0xb8] sm:$0xff]
        %v874 = vld [vmem:[%s286 + $0xc0] sm:$0xff]
        %v875 = vld [vmem:[%s286 + $0xc8] sm:$0xff]
        %v876 = vld [vmem:[%s286 + $0xd0] sm:$0xff]
        %v877 = vld [vmem:[%s286 + $0xd8] sm:$0xff]
        %v878 = vld [vmem:[%s286 + $0xe0] sm:$0xff]
        %v879 = vld [vmem:[%s286 + $0xe8] sm:$0xff]
        %v880 = vld [vmem:[%s286 + $0xf0] sm:$0xff]
        %v881 = vld [vmem:[%s286 + $0xf8] sm:$0xff]
        %v882 = vld [vmem:[%s286 + $0x100] sm:$0xff]
        %v883 = vld [vmem:[%s286 + $0x108] sm:$0xff]
        %v884 = vld [vmem:[%s286 + $0x110] sm:$0xff]
        %v885 = vld [vmem:[%s286 + $0x118] sm:$0xff]
        %v886 = vld [vmem:[%s286 + $0x120] sm:$0xff]
        %v887 = vld [vmem:[%s286 + $0x128] sm:$0xff]
        %v888 = vld [vmem:[%s286 + $0x130] sm:$0xff]
        %v889 = vld [vmem:[%s286 + $0x138] sm:$0xff]
        %v890 = vld [vmem:[%s286 + $0x140] sm:$0xff]
        %v891 = vld [vmem:[%s286 + $0x148] sm:$0xff]
        %v892 = vld [vmem:[%s286 + $0x150] sm:$0xff]
        %v893 = vld [vmem:[%s286 + $0x158] sm:$0xff]
        %v894 = vld [vmem:[%s286 + $0x160] sm:$0xff]
        %v895 = vld [vmem:[%s286 + $0x168] sm:$0xff]
        %v896 = vld [vmem:[%s286 + $0x170] sm:$0xff]
        %v897 = vld [vmem:[%s286 + $0x178] sm:$0xff]
        %v898 = vld [vmem:[%s286 + $0x180] sm:$0xff]
        %v899 = vld [vmem:[%s286 + $0x188] sm:$0xff]
        %v900 = vld [vmem:[%s286 + $0x190] sm:$0xff]
        %v901 = vld [vmem:[%s286 + $0x198] sm:$0xff]
        %v902 = vld [vmem:[%s286 + $0x1a0] sm:$0xff]
        %v903 = vld [vmem:[%s286 + $0x1a8] sm:$0xff]
        %v904 = vld [vmem:[%s286 + $0x1b0] sm:$0xff]
        %v905 = vld [vmem:[%s286 + $0x1b8] sm:$0xff]
        %v906 = vld [vmem:[%s286 + $0x1c0] sm:$0xff]
        %v907 = vld [vmem:[%s286 + $0x1c8] sm:$0xff]
        %v908 = vld [vmem:[%s286 + $0x1d0] sm:$0xff]
        %v909 = vld [vmem:[%s286 + $0x1d8] sm:$0xff]
        %v910 = vld [vmem:[%s286 + $0x1e0] sm:$0xff]
        %v911 = vld [vmem:[%s286 + $0x1e8] sm:$0xff]
        %v912 = vld [vmem:[%s286 + $0x1f0] sm:$0xff]
        %v913 = vld [vmem:[%s286 + $0x1f8] sm:$0xff]
        %914 = vxpose.xlu0.b32.start [1/16] %v850, 128
        %915 = vxpose.xlu0.b32.cont [2/16] %v852, 128
        %916 = vxpose.xlu0.b32.cont [3/16] %v854, 128
        %917 = vxpose.xlu0.b32.cont [4/16] %v856, 128
        %918 = vxpose.xlu0.b32.cont [5/16] %v858, 128
        %919 = vxpose.xlu0.b32.cont [6/16] %v860, 128
        %920 = vxpose.xlu0.b32.cont [7/16] %v862, 128
        %921 = vxpose.xlu0.b32.cont [8/16] %v864, 128
        %922 = vxpose.xlu0.b32.cont [9/16] %v866, 128
        %923 = vxpose.xlu0.b32.cont [10/16] %v868, 128
        %924 = vxpose.xlu0.b32.cont [11/16] %v870, 128
        %925 = vxpose.xlu0.b32.cont [12/16] %v872, 128
        %926 = vxpose.xlu0.b32.cont [13/16] %v874, 128
        %927 = vxpose.xlu0.b32.cont [14/16] %v876, 128
        %928 = vxpose.xlu0.b32.cont [15/16] %v878, 128
        %929 = vxpose.xlu0.b32.end [16/16] %v880, 128
        %v930 = vpop.trf.xlu0
        %v931 = vpop.trf.xlu0
        %v932 = vpop.trf.xlu0
        %v933 = vpop.trf.xlu0
        %v934 = vpop.trf.xlu0
        %v935 = vpop.trf.xlu0
        %v936 = vpop.trf.xlu0
        %v937 = vpop.trf.xlu0
        %v938 = vpop.trf.xlu0
        %v939 = vpop.trf.xlu0
        %v940 = vpop.trf.xlu0
        %v941 = vpop.trf.xlu0
        %v942 = vpop.trf.xlu0
        %v943 = vpop.trf.xlu0
        %v944 = vpop.trf.xlu0
        %v945 = vpop.trf.xlu0
        %946 = vxpose.xlu0.b32.start [1/16] %v851, 128
        %947 = vxpose.xlu0.b32.cont [2/16] %v853, 128
        %948 = vxpose.xlu0.b32.cont [3/16] %v855, 128
        %949 = vxpose.xlu0.b32.cont [4/16] %v857, 128
        %950 = vxpose.xlu0.b32.cont [5/16] %v859, 128
        %951 = vxpose.xlu0.b32.cont [6/16] %v861, 128
        %952 = vxpose.xlu0.b32.cont [7/16] %v863, 128
        %953 = vxpose.xlu0.b32.cont [8/16] %v865, 128
        %954 = vxpose.xlu0.b32.cont [9/16] %v867, 128
        %955 = vxpose.xlu0.b32.cont [10/16] %v869, 128
        %956 = vxpose.xlu0.b32.cont [11/16] %v871, 128
        %957 = vxpose.xlu0.b32.cont [12/16] %v873, 128
        %958 = vxpose.xlu0.b32.cont [13/16] %v875, 128
        %959 = vxpose.xlu0.b32.cont [14/16] %v877, 128
        %960 = vxpose.xlu0.b32.cont [15/16] %v879, 128
        %961 = vxpose.xlu0.b32.end [16/16] %v881, 128
        %v962 = vpop.trf.xlu0
        %v963 = vpop.trf.xlu0
        %v964 = vpop.trf.xlu0
        %v965 = vpop.trf.xlu0
        %v966 = vpop.trf.xlu0
        %v967 = vpop.trf.xlu0
        %v968 = vpop.trf.xlu0
        %v969 = vpop.trf.xlu0
        %v970 = vpop.trf.xlu0
        %v971 = vpop.trf.xlu0
        %v972 = vpop.trf.xlu0
        %v973 = vpop.trf.xlu0
        %v974 = vpop.trf.xlu0
        %v975 = vpop.trf.xlu0
        %v976 = vpop.trf.xlu0
        %v977 = vpop.trf.xlu0
        %978 = vmatprep.subr.mxu0 %v787
        %979 = vmatpush1.msra.mxu0 %v786
        %980 = vmatprep.subr.mxu0 %v789
        %981 = vmatpush1.msra.mxu0 %v788
        %982 = vmatprep.subr.mxu0 %v791
        %983 = vmatpush1.msra.mxu0 %v790
        %984 = vmatprep.subr.mxu0 %v793
        %985 = vmatpush1.msra.mxu0 %v792
        %986 = vmatprep.subr.mxu0 %v795
        %987 = vmatpush1.msra.mxu0 %v794
        %988 = vmatprep.subr.mxu0 %v797
        %989 = vmatpush1.msra.mxu0 %v796
        %990 = vmatprep.subr.mxu0 %v799
        %991 = vmatpush1.msra.mxu0 %v798
        %992 = vmatprep.subr.mxu0 %v801
        %993 = vmatpush1.msra.mxu0 %v800
        %994 = vmatprep.subr.mxu0 %v803
        %995 = vmatpush1.msra.mxu0 %v802
        %996 = vmatprep.subr.mxu0 %v805
        %997 = vmatpush1.msra.mxu0 %v804
        %998 = vmatprep.subr.mxu0 %v807
        %999 = vmatpush1.msra.mxu0 %v806
        %1000 = vmatprep.subr.mxu0 %v809
        %1001 = vmatpush1.msra.mxu0 %v808
        %1002 = vmatprep.subr.mxu0 %v811
        %1003 = vmatpush1.msra.mxu0 %v810
        %1004 = vmatprep.subr.mxu0 %v813
        %1005 = vmatpush1.msra.mxu0 %v812
        %1006 = vmatprep.subr.mxu0 %v815
        %1007 = vmatpush1.msra.mxu0 %v814
        %1008 = vmatprep.subr.mxu0 %v817
        %1009 = vmatpush1.msra.mxu0 %v816
        %1010 = vmatprep.subr.mxu0 0.0
        %1011 = vmatpush1.msra.mxu0 0.0
        %1012 = vmatprep.subr.mxu0 0.0
        %1013 = vmatpush1.msra.mxu0 0.0
        %1014 = vmatprep.subr.mxu0 0.0
        %1015 = vmatpush1.msra.mxu0 0.0
        %1016 = vmatprep.subr.mxu0 0.0
        %1017 = vmatpush1.msra.mxu0 0.0
        %1018 = vmatprep.subr.mxu0 0.0
        %1019 = vmatpush1.msra.mxu0 0.0
        %1020 = vmatprep.subr.mxu0 0.0
        %1021 = vmatpush1.msra.mxu0 0.0
        %1022 = vmatprep.subr.mxu0 0.0
        %1023 = vmatpush1.msra.mxu0 0.0
        %1024 = vmatprep.subr.mxu0 0.0
        %1025 = vmatpush1.msra.mxu0 0.0
        %1026 = vmatprep.subr.mxu0 0.0
        %1027 = vmatpush1.msra.mxu0 0.0
        %1028 = vmatprep.subr.mxu0 0.0
        %1029 = vmatpush1.msra.mxu0 0.0
        %1030 = vmatprep.subr.mxu0 0.0
        %1031 = vmatpush1.msra.mxu0 0.0
        %1032 = vmatprep.subr.mxu0 0.0
        %1033 = vmatpush1.msra.mxu0 0.0
        %1034 = vmatprep.subr.mxu0 0.0
        %1035 = vmatpush1.msra.mxu0 0.0
        %1036 = vmatprep.subr.mxu0 0.0
        %1037 = vmatpush1.msra.mxu0 0.0
        %1038 = vmatprep.subr.mxu0 0.0
        %1039 = vmatpush1.msra.mxu0 0.0
        %1040 = vmatprep.subr.mxu0 0.0
        %1041 = vmatpush1.msra.mxu0 0.0
        %1042 = vmatprep.mubr.f32.mxu0 0.0
        %1043 = vmatmul.mubr.f32.gmra.mrb[0].mxu0 %v930
        %v1044 = vpop.f32.mrb[0].mxu0
        %v1045 = vadd.f32 0.0, %v1044
        %v1046 = vpop.f32.mrb[0].mxu0
        %v1047 = vadd.f32 0.0, %v1046
        %1048 = vmatprep.mubr.f32.mxu0 0.0
        %1049 = vmatmul.mubr.f32.gmra.mrb[0].mxu0 %v931
        %v1050 = vpop.f32.mrb[0].mxu0
        %v1051 = vadd.f32 0.0, %v1050
        %v1052 = vpop.f32.mrb[0].mxu0
        %v1053 = vadd.f32 0.0, %v1052
        %1054 = vmatprep.mubr.f32.mxu0 0.0
        %1055 = vmatmul.mubr.f32.gmra.mrb[0].mxu0 %v932
        %v1056 = vpop.f32.mrb[0].mxu0
        %v1057 = vadd.f32 0.0, %v1056
        %v1058 = vpop.f32.mrb[0].mxu0
        %v1059 = vadd.f32 0.0, %v1058
        %1060 = vmatprep.mubr.f32.mxu0 0.0
        %1061 = vmatmul.mubr.f32.gmra.mrb[0].mxu0 %v933
        %v1062 = vpop.f32.mrb[0].mxu0
        %v1063 = vadd.f32 0.0, %v1062
        %v1064 = vpop.f32.mrb[0].mxu0
        %v1065 = vadd.f32 0.0, %v1064
        %1066 = vmatprep.mubr.f32.mxu0 0.0
        %1067 = vmatmul.mubr.f32.gmra.mrb[0].mxu0 %v934
        %v1068 = vpop.f32.mrb[0].mxu0
        %v1069 = vadd.f32 0.0, %v1068
        %v1070 = vpop.f32.mrb[0].mxu0
        %v1071 = vadd.f32 0.0, %v1070
        %1072 = vmatprep.mubr.f32.mxu0 0.0
        %1073 = vmatmul.mubr.f32.gmra.mrb[0].mxu0 %v935
        %v1074 = vpop.f32.mrb[0].mxu0
        %v1075 = vadd.f32 0.0, %v1074
        %v1076 = vpop.f32.mrb[0].mxu0
        %v1077 = vadd.f32 0.0, %v1076
        %1078 = vmatprep.mubr.f32.mxu0 0.0
        %1079 = vmatmul.mubr.f32.gmra.mrb[0].mxu0 %v936
        %v1080 = vpop.f32.mrb[0].mxu0
        %v1081 = vadd.f32 0.0, %v1080
        %v1082 = vpop.f32.mrb[0].mxu0
        %v1083 = vadd.f32 0.0, %v1082
        %1084 = vmatprep.mubr.f32.mxu0 0.0
        %1085 = vmatmul.mubr.f32.gmra.mrb[0].mxu0 %v937
        %v1086 = vpop.f32.mrb[0].mxu0
        %v1087 = vadd.f32 0.0, %v1086
        %v1088 = vpop.f32.mrb[0].mxu0
        %v1089 = vadd.f32 0.0, %v1088
        %1090 = vmatprep.mubr.f32.mxu0 0.0
        %1091 = vmatmul.mubr.f32.gmra.mrb[0].mxu0 %v938
        %v1092 = vpop.f32.mrb[0].mxu0
        %v1093 = vadd.f32 0.0, %v1092
        %v1094 = vpop.f32.mrb[0].mxu0
        %v1095 = vadd.f32 0.0, %v1094
        %1096 = vmatprep.mubr.f32.mxu0 0.0
        %1097 = vmatmul.mubr.f32.gmra.mrb[0].mxu0 %v939
        %v1098 = vpop.f32.mrb[0].mxu0
        %v1099 = vadd.f32 0.0, %v1098
        %v1100 = vpop.f32.mrb[0].mxu0
        %v1101 = vadd.f32 0.0, %v1100
        %1102 = vmatprep.mubr.f32.mxu0 0.0
        %1103 = vmatmul.mubr.f32.gmra.mrb[0].mxu0 %v940
        %v1104 = vpop.f32.mrb[0].mxu0
        %v1105 = vadd.f32 0.0, %v1104
        %v1106 = vpop.f32.mrb[0].mxu0
        %v1107 = vadd.f32 0.0, %v1106
        %1108 = vmatprep.mubr.f32.mxu0 0.0
        %1109 = vmatmul.mubr.f32.gmra.mrb[0].mxu0 %v941
        %v1110 = vpop.f32.mrb[0].mxu0
        %v1111 = vadd.f32 0.0, %v1110
        %v1112 = vpop.f32.mrb[0].mxu0
        %v1113 = vadd.f32 0.0, %v1112
        %1114 = vmatprep.mubr.f32.mxu0 0.0
        %1115 = vmatmul.mubr.f32.gmra.mrb[0].mxu0 %v942
        %v1116 = vpop.f32.mrb[0].mxu0
        %v1117 = vadd.f32 0.0, %v1116
        %v1118 = vpop.f32.mrb[0].mxu0
        %v1119 = vadd.f32 0.0, %v1118
        %1120 = vmatprep.mubr.f32.mxu0 0.0
        %1121 = vmatmul.mubr.f32.gmra.mrb[0].mxu0 %v943
        %v1122 = vpop.f32.mrb[0].mxu0
        %v1123 = vadd.f32 0.0, %v1122
        %v1124 = vpop.f32.mrb[0].mxu0
        %v1125 = vadd.f32 0.0, %v1124
        %1126 = vmatprep.mubr.f32.mxu0 0.0
        %1127 = vmatmul.mubr.f32.gmra.mrb[0].mxu0 %v944
        %v1128 = vpop.f32.mrb[0].mxu0
        %v1129 = vadd.f32 0.0, %v1128
        %v1130 = vpop.f32.mrb[0].mxu0
        %v1131 = vadd.f32 0.0, %v1130
        %1132 = vmatprep.mubr.f32.mxu0 0.0
        %1133 = vmatmul.mubr.f32.gmra.mrb[0].mxu0 %v945
        %v1134 = vpop.f32.mrb[0].mxu0
        %v1135 = vadd.f32 0.0, %v1134
        %v1136 = vpop.f32.mrb[0].mxu0
        %v1137 = vadd.f32 0.0, %v1136
        %1138 = vmatprep.mubr.f32.mxu0 0.0
        %1139 = vmatmul.mubr.f32.gmra.mrb[0].mxu0 %v962
        %v1140 = vpop.f32.mrb[0].mxu0
        %v1141 = vadd.f32 0.0, %v1140
        %v1142 = vpop.f32.mrb[0].mxu0
        %v1143 = vadd.f32 0.0, %v1142
        %1144 = vmatprep.mubr.f32.mxu0 0.0
        %1145 = vmatmul.mubr.f32.gmra.mrb[0].mxu0 %v963
        %v1146 = vpop.f32.mrb[0].mxu0
        %v1147 = vadd.f32 0.0, %v1146
        %v1148 = vpop.f32.mrb[0].mxu0
        %v1149 = vadd.f32 0.0, %v1148
        %1150 = vmatprep.mubr.f32.mxu0 0.0
        %1151 = vmatmul.mubr.f32.gmra.mrb[0].mxu0 %v964
        %v1152 = vpop.f32.mrb[0].mxu0
        %v1153 = vadd.f32 0.0, %v1152
        %v1154 = vpop.f32.mrb[0].mxu0
        %v1155 = vadd.f32 0.0, %v1154
        %1156 = vmatprep.mubr.f32.mxu0 0.0
        %1157 = vmatmul.mubr.f32.gmra.mrb[0].mxu0 %v965
        %v1158 = vpop.f32.mrb[0].mxu0
        %v1159 = vadd.f32 0.0, %v1158
        %v1160 = vpop.f32.mrb[0].mxu0
        %v1161 = vadd.f32 0.0, %v1160
        %1162 = vmatprep.mubr.f32.mxu0 0.0
        %1163 = vmatmul.mubr.f32.gmra.mrb[0].mxu0 %v966
        %v1164 = vpop.f32.mrb[0].mxu0
        %v1165 = vadd.f32 0.0, %v1164
        %v1166 = vpop.f32.mrb[0].mxu0
        %v1167 = vadd.f32 0.0, %v1166
        %1168 = vmatprep.mubr.f32.mxu0 0.0
        %1169 = vmatmul.mubr.f32.gmra.mrb[0].mxu0 %v967
        %v1170 = vpop.f32.mrb[0].mxu0
        %v1171 = vadd.f32 0.0, %v1170
        %v1172 = vpop.f32.mrb[0].mxu0
        %v1173 = vadd.f32 0.0, %v1172
        %1174 = vmatprep.mubr.f32.mxu0 0.0
        %1175 = vmatmul.mubr.f32.gmra.mrb[0].mxu0 %v968
        %v1176 = vpop.f32.mrb[0].mxu0
        %v1177 = vadd.f32 0.0, %v1176
        %v1178 = vpop.f32.mrb[0].mxu0
        %v1179 = vadd.f32 0.0, %v1178
        %1180 = vmatprep.mubr.f32.mxu0 0.0
        %1181 = vmatmul.mubr.f32.gmra.mrb[0].mxu0 %v969
        %v1182 = vpop.f32.mrb[0].mxu0
        %v1183 = vadd.f32 0.0, %v1182
        %v1184 = vpop.f32.mrb[0].mxu0
        %v1185 = vadd.f32 0.0, %v1184
        %1186 = vmatprep.mubr.f32.mxu0 0.0
        %1187 = vmatmul.mubr.f32.gmra.mrb[0].mxu0 %v970
        %v1188 = vpop.f32.mrb[0].mxu0
        %v1189 = vadd.f32 0.0, %v1188
        %v1190 = vpop.f32.mrb[0].mxu0
        %v1191 = vadd.f32 0.0, %v1190
        %1192 = vmatprep.mubr.f32.mxu0 0.0
        %1193 = vmatmul.mubr.f32.gmra.mrb[0].mxu0 %v971
        %v1194 = vpop.f32.mrb[0].mxu0
        %v1195 = vadd.f32 0.0, %v1194
        %v1196 = vpop.f32.mrb[0].mxu0
        %v1197 = vadd.f32 0.0, %v1196
        %1198 = vmatprep.mubr.f32.mxu0 0.0
        %1199 = vmatmul.mubr.f32.gmra.mrb[0].mxu0 %v972
        %v1200 = vpop.f32.mrb[0].mxu0
        %v1201 = vadd.f32 0.0, %v1200
        %v1202 = vpop.f32.mrb[0].mxu0
        %v1203 = vadd.f32 0.0, %v1202
        %1204 = vmatprep.mubr.f32.mxu0 0.0
        %1205 = vmatmul.mubr.f32.gmra.mrb[0].mxu0 %v973
        %v1206 = vpop.f32.mrb[0].mxu0
        %v1207 = vadd.f32 0.0, %v1206
        %v1208 = vpop.f32.mrb[0].mxu0
        %v1209 = vadd.f32 0.0, %v1208
        %1210 = vmatprep.mubr.f32.mxu0 0.0
        %1211 = vmatmul.mubr.f32.gmra.mrb[0].mxu0 %v974
        %v1212 = vpop.f32.mrb[0].mxu0
        %v1213 = vadd.f32 0.0, %v1212
        %v1214 = vpop.f32.mrb[0].mxu0
        %v1215 = vadd.f32 0.0, %v1214
        %1216 = vmatprep.mubr.f32.mxu0 0.0
        %1217 = vmatmul.mubr.f32.gmra.mrb[0].mxu0 %v975
        %v1218 = vpop.f32.mrb[0].mxu0
        %v1219 = vadd.f32 0.0, %v1218
        %v1220 = vpop.f32.mrb[0].mxu0
        %v1221 = vadd.f32 0.0, %v1220
        %1222 = vmatprep.mubr.f32.mxu0 0.0
        %1223 = vmatmul.mubr.f32.gmra.mrb[0].mxu0 %v976
        %v1224 = vpop.f32.mrb[0].mxu0
        %v1225 = vadd.f32 0.0, %v1224
        %v1226 = vpop.f32.mrb[0].mxu0
        %v1227 = vadd.f32 0.0, %v1226
        %1228 = vmatprep.mubr.f32.mxu0 0.0
        %1229 = vmatmul.mubr.f32.gmra.mrb[0].mxu0 %v977
        %v1230 = vpop.f32.mrb[0].mxu0
        %v1231 = vadd.f32 0.0, %v1230
        %v1232 = vpop.f32.mrb[0].mxu0
        %v1233 = vadd.f32 0.0, %v1232
        %1234 = vdwg.mxu0
        %1235 = vxpose.xlu0.b32.start [1/16] %v882, 128
        %1236 = vxpose.xlu0.b32.cont [2/16] %v884, 128
        %1237 = vxpose.xlu0.b32.cont [3/16] %v886, 128
        %1238 = vxpose.xlu0.b32.cont [4/16] %v888, 128
        %1239 = vxpose.xlu0.b32.cont [5/16] %v890, 128
        %1240 = vxpose.xlu0.b32.cont [6/16] %v892, 128
        %1241 = vxpose.xlu0.b32.cont [7/16] %v894, 128
        %1242 = vxpose.xlu0.b32.cont [8/16] %v896, 128
        %1243 = vxpose.xlu0.b32.cont [9/16] %v898, 128
        %1244 = vxpose.xlu0.b32.cont [10/16] %v900, 128
        %1245 = vxpose.xlu0.b32.cont [11/16] %v902, 128
        %1246 = vxpose.xlu0.b32.cont [12/16] %v904, 128
        %1247 = vxpose.xlu0.b32.cont [13/16] %v906, 128
        %1248 = vxpose.xlu0.b32.cont [14/16] %v908, 128
        %1249 = vxpose.xlu0.b32.cont [15/16] %v910, 128
        %1250 = vxpose.xlu0.b32.end [16/16] %v912, 128
        %v1251 = vpop.trf.xlu0
        %v1252 = vpop.trf.xlu0
        %v1253 = vpop.trf.xlu0
        %v1254 = vpop.trf.xlu0
        %v1255 = vpop.trf.xlu0
        %v1256 = vpop.trf.xlu0
        %v1257 = vpop.trf.xlu0
        %v1258 = vpop.trf.xlu0
        %v1259 = vpop.trf.xlu0
        %v1260 = vpop.trf.xlu0
        %v1261 = vpop.trf.xlu0
        %v1262 = vpop.trf.xlu0
        %v1263 = vpop.trf.xlu0
        %v1264 = vpop.trf.xlu0
        %v1265 = vpop.trf.xlu0
        %v1266 = vpop.trf.xlu0
        %1267 = vxpose.xlu0.b32.start [1/16] %v883, 128
        %1268 = vxpose.xlu0.b32.cont [2/16] %v885, 128
        %1269 = vxpose.xlu0.b32.cont [3/16] %v887, 128
        %1270 = vxpose.xlu0.b32.cont [4/16] %v889, 128
        %1271 = vxpose.xlu0.b32.cont [5/16] %v891, 128
        %1272 = vxpose.xlu0.b32.cont [6/16] %v893, 128
        %1273 = vxpose.xlu0.b32.cont [7/16] %v895, 128
        %1274 = vxpose.xlu0.b32.cont [8/16] %v897, 128
        %1275 = vxpose.xlu0.b32.cont [9/16] %v899, 128
        %1276 = vxpose.xlu0.b32.cont [10/16] %v901, 128
        %1277 = vxpose.xlu0.b32.cont [11/16] %v903, 128
        %1278 = vxpose.xlu0.b32.cont [12/16] %v905, 128
        %1279 = vxpose.xlu0.b32.cont [13/16] %v907, 128
        %1280 = vxpose.xlu0.b32.cont [14/16] %v909, 128
        %1281 = vxpose.xlu0.b32.cont [15/16] %v911, 128
        %1282 = vxpose.xlu0.b32.end [16/16] %v913, 128
        %v1283 = vpop.trf.xlu0
        %v1284 = vpop.trf.xlu0
        %v1285 = vpop.trf.xlu0
        %v1286 = vpop.trf.xlu0
        %v1287 = vpop.trf.xlu0
        %v1288 = vpop.trf.xlu0
        %v1289 = vpop.trf.xlu0
        %v1290 = vpop.trf.xlu0
        %v1291 = vpop.trf.xlu0
        %v1292 = vpop.trf.xlu0
        %v1293 = vpop.trf.xlu0
        %v1294 = vpop.trf.xlu0
        %v1295 = vpop.trf.xlu0
        %v1296 = vpop.trf.xlu0
        %v1297 = vpop.trf.xlu0
        %v1298 = vpop.trf.xlu0
        %1299 = vmatprep.subr.mxu0 %v819
        %1300 = vmatpush1.msra.mxu0 %v818
        %1301 = vmatprep.subr.mxu0 %v821
        %1302 = vmatpush1.msra.mxu0 %v820
        %1303 = vmatprep.subr.mxu0 %v823
        %1304 = vmatpush1.msra.mxu0 %v822
        %1305 = vmatprep.subr.mxu0 %v825
        %1306 = vmatpush1.msra.mxu0 %v824
        %1307 = vmatprep.subr.mxu0 %v827
        %1308 = vmatpush1.msra.mxu0 %v826
        %1309 = vmatprep.subr.mxu0 %v829
        %1310 = vmatpush1.msra.mxu0 %v828
        %1311 = vmatprep.subr.mxu0 %v831
        %1312 = vmatpush1.msra.mxu0 %v830
        %1313 = vmatprep.subr.mxu0 %v833
        %1314 = vmatpush1.msra.mxu0 %v832
        %1315 = vmatprep.subr.mxu0 %v835
        %1316 = vmatpush1.msra.mxu0 %v834
        %1317 = vmatprep.subr.mxu0 %v837
        %1318 = vmatpush1.msra.mxu0 %v836
        %1319 = vmatprep.subr.mxu0 %v839
        %1320 = vmatpush1.msra.mxu0 %v838
        %1321 = vmatprep.subr.mxu0 %v841
        %1322 = vmatpush1.msra.mxu0 %v840
        %1323 = vmatprep.subr.mxu0 %v843
        %1324 = vmatpush1.msra.mxu0 %v842
        %1325 = vmatprep.subr.mxu0 %v845
        %1326 = vmatpush1.msra.mxu0 %v844
        %1327 = vmatprep.subr.mxu0 %v847
        %1328 = vmatpush1.msra.mxu0 %v846
        %1329 = vmatprep.subr.mxu0 %v849
        %1330 = vmatpush1.msra.mxu0 %v848
        %1331 = vmatprep.subr.mxu0 0.0
        %1332 = vmatpush1.msra.mxu0 0.0
        %1333 = vmatprep.subr.mxu0 0.0
        %1334 = vmatpush1.msra.mxu0 0.0
        %1335 = vmatprep.subr.mxu0 0.0
        %1336 = vmatpush1.msra.mxu0 0.0
        %1337 = vmatprep.subr.mxu0 0.0
        %1338 = vmatpush1.msra.mxu0 0.0
        %1339 = vmatprep.subr.mxu0 0.0
        %1340 = vmatpush1.msra.mxu0 0.0
        %1341 = vmatprep.subr.mxu0 0.0
        %1342 = vmatpush1.msra.mxu0 0.0
        %1343 = vmatprep.subr.mxu0 0.0
        %1344 = vmatpush1.msra.mxu0 0.0
        %1345 = vmatprep.subr.mxu0 0.0
        %1346 = vmatpush1.msra.mxu0 0.0
        %1347 = vmatprep.subr.mxu0 0.0
        %1348 = vmatpush1.msra.mxu0 0.0
        %1349 = vmatprep.subr.mxu0 0.0
        %1350 = vmatpush1.msra.mxu0 0.0
        %1351 = vmatprep.subr.mxu0 0.0
        %1352 = vmatpush1.msra.mxu0 0.0
        %1353 = vmatprep.subr.mxu0 0.0
        %1354 = vmatpush1.msra.mxu0 0.0
        %1355 = vmatprep.subr.mxu0 0.0
        %1356 = vmatpush1.msra.mxu0 0.0
        %1357 = vmatprep.subr.mxu0 0.0
        %1358 = vmatpush1.msra.mxu0 0.0
        %1359 = vmatprep.subr.mxu0 0.0
        %1360 = vmatpush1.msra.mxu0 0.0
        %1361 = vmatprep.subr.mxu0 0.0
        %1362 = vmatpush1.msra.mxu0 0.0
        %1363 = vmatprep.mubr.f32.mxu0 0.0
        %1364 = vmatmul.mubr.f32.gmra.mrb[0].mxu0 %v1251
        %v1365 = vpop.f32.mrb[0].mxu0
        %v1366 = vadd.f32 0.0, %v1365
        %v1367 = vpop.f32.mrb[0].mxu0
        %v1368 = vadd.f32 0.0, %v1367
        %1369 = vmatprep.mubr.f32.mxu0 0.0
        %1370 = vmatmul.mubr.f32.gmra.mrb[0].mxu0 %v1252
        %v1371 = vpop.f32.mrb[0].mxu0
        %v1372 = vadd.f32 0.0, %v1371
        %v1373 = vpop.f32.mrb[0].mxu0
        %v1374 = vadd.f32 0.0, %v1373
        %1375 = vmatprep.mubr.f32.mxu0 0.0
        %1376 = vmatmul.mubr.f32.gmra.mrb[0].mxu0 %v1253
        %v1377 = vpop.f32.mrb[0].mxu0
        %v1378 = vadd.f32 0.0, %v1377
        %v1379 = vpop.f32.mrb[0].mxu0
        %v1380 = vadd.f32 0.0, %v1379
        %1381 = vmatprep.mubr.f32.mxu0 0.0
        %1382 = vmatmul.mubr.f32.gmra.mrb[0].mxu0 %v1254
        %v1383 = vpop.f32.mrb[0].mxu0
        %v1384 = vadd.f32 0.0, %v1383
        %v1385 = vpop.f32.mrb[0].mxu0
        %v1386 = vadd.f32 0.0, %v1385
        %1387 = vmatprep.mubr.f32.mxu0 0.0
        %1388 = vmatmul.mubr.f32.gmra.mrb[0].mxu0 %v1255
        %v1389 = vpop.f32.mrb[0].mxu0
        %v1390 = vadd.f32 0.0, %v1389
        %v1391 = vpop.f32.mrb[0].mxu0
        %v1392 = vadd.f32 0.0, %v1391
        %1393 = vmatprep.mubr.f32.mxu0 0.0
        %1394 = vmatmul.mubr.f32.gmra.mrb[0].mxu0 %v1256
        %v1395 = vpop.f32.mrb[0].mxu0
        %v1396 = vadd.f32 0.0, %v1395
        %v1397 = vpop.f32.mrb[0].mxu0
        %v1398 = vadd.f32 0.0, %v1397
        %1399 = vmatprep.mubr.f32.mxu0 0.0
        %1400 = vmatmul.mubr.f32.gmra.mrb[0].mxu0 %v1257
        %v1401 = vpop.f32.mrb[0].mxu0
        %v1402 = vadd.f32 0.0, %v1401
        %v1403 = vpop.f32.mrb[0].mxu0
        %v1404 = vadd.f32 0.0, %v1403
        %1405 = vmatprep.mubr.f32.mxu0 0.0
        %1406 = vmatmul.mubr.f32.gmra.mrb[0].mxu0 %v1258
        %v1407 = vpop.f32.mrb[0].mxu0
        %v1408 = vadd.f32 0.0, %v1407
        %v1409 = vpop.f32.mrb[0].mxu0
        %v1410 = vadd.f32 0.0, %v1409
        %1411 = vmatprep.mubr.f32.mxu0 0.0
        %1412 = vmatmul.mubr.f32.gmra.mrb[0].mxu0 %v1259
        %v1413 = vpop.f32.mrb[0].mxu0
        %v1414 = vadd.f32 0.0, %v1413
        %v1415 = vpop.f32.mrb[0].mxu0
        %v1416 = vadd.f32 0.0, %v1415
        %1417 = vmatprep.mubr.f32.mxu0 0.0
        %1418 = vmatmul.mubr.f32.gmra.mrb[0].mxu0 %v1260
        %v1419 = vpop.f32.mrb[0].mxu0
        %v1420 = vadd.f32 0.0, %v1419
        %v1421 = vpop.f32.mrb[0].mxu0
        %v1422 = vadd.f32 0.0, %v1421
        %1423 = vmatprep.mubr.f32.mxu0 0.0
        %1424 = vmatmul.mubr.f32.gmra.mrb[0].mxu0 %v1261
        %v1425 = vpop.f32.mrb[0].mxu0
        %v1426 = vadd.f32 0.0, %v1425
        %v1427 = vpop.f32.mrb[0].mxu0
        %v1428 = vadd.f32 0.0, %v1427
        %1429 = vmatprep.mubr.f32.mxu0 0.0
        %1430 = vmatmul.mubr.f32.gmra.mrb[0].mxu0 %v1262
        %v1431 = vpop.f32.mrb[0].mxu0
        %v1432 = vadd.f32 0.0, %v1431
        %v1433 = vpop.f32.mrb[0].mxu0
        %v1434 = vadd.f32 0.0, %v1433
        %1435 = vmatprep.mubr.f32.mxu0 0.0
        %1436 = vmatmul.mubr.f32.gmra.mrb[0].mxu0 %v1263
        %v1437 = vpop.f32.mrb[0].mxu0
        %v1438 = vadd.f32 0.0, %v1437
        %v1439 = vpop.f32.mrb[0].mxu0
        %v1440 = vadd.f32 0.0, %v1439
        %1441 = vmatprep.mubr.f32.mxu0 0.0
        %1442 = vmatmul.mubr.f32.gmra.mrb[0].mxu0 %v1264
        %v1443 = vpop.f32.mrb[0].mxu0
        %v1444 = vadd.f32 0.0, %v1443
        %v1445 = vpop.f32.mrb[0].mxu0
        %v1446 = vadd.f32 0.0, %v1445
        %1447 = vmatprep.mubr.f32.mxu0 0.0
        %1448 = vmatmul.mubr.f32.gmra.mrb[0].mxu0 %v1265
        %v1449 = vpop.f32.mrb[0].mxu0
        %v1450 = vadd.f32 0.0, %v1449
        %v1451 = vpop.f32.mrb[0].mxu0
        %v1452 = vadd.f32 0.0, %v1451
        %1453 = vmatprep.mubr.f32.mxu0 0.0
        %1454 = vmatmul.mubr.f32.gmra.mrb[0].mxu0 %v1266
        %v1455 = vpop.f32.mrb[0].mxu0
        %v1456 = vadd.f32 0.0, %v1455
        %v1457 = vpop.f32.mrb[0].mxu0
        %v1458 = vadd.f32 0.0, %v1457
        %1459 = vmatprep.mubr.f32.mxu0 0.0
        %1460 = vmatmul.mubr.f32.gmra.mrb[0].mxu0 %v1283
        %v1461 = vpop.f32.mrb[0].mxu0
        %v1462 = vadd.f32 0.0, %v1461
        %v1463 = vpop.f32.mrb[0].mxu0
        %v1464 = vadd.f32 0.0, %v1463
        %1465 = vmatprep.mubr.f32.mxu0 0.0
        %1466 = vmatmul.mubr.f32.gmra.mrb[0].mxu0 %v1284
        %v1467 = vpop.f32.mrb[0].mxu0
        %v1468 = vadd.f32 0.0, %v1467
        %v1469 = vpop.f32.mrb[0].mxu0
        %v1470 = vadd.f32 0.0, %v1469
        %1471 = vmatprep.mubr.f32.mxu0 0.0
        %1472 = vmatmul.mubr.f32.gmra.mrb[0].mxu0 %v1285
        %v1473 = vpop.f32.mrb[0].mxu0
        %v1474 = vadd.f32 0.0, %v1473
        %v1475 = vpop.f32.mrb[0].mxu0
        %v1476 = vadd.f32 0.0, %v1475
        %1477 = vmatprep.mubr.f32.mxu0 0.0
        %1478 = vmatmul.mubr.f32.gmra.mrb[0].mxu0 %v1286
        %v1479 = vpop.f32.mrb[0].mxu0
        %v1480 = vadd.f32 0.0, %v1479
        %v1481 = vpop.f32.mrb[0].mxu0
        %v1482 = vadd.f32 0.0, %v1481
        %1483 = vmatprep.mubr.f32.mxu0 0.0
        %1484 = vmatmul.mubr.f32.gmra.mrb[0].mxu0 %v1287
        %v1485 = vpop.f32.mrb[0].mxu0
        %v1486 = vadd.f32 0.0, %v1485
        %v1487 = vpop.f32.mrb[0].mxu0
        %v1488 = vadd.f32 0.0, %v1487
        %1489 = vmatprep.mubr.f32.mxu0 0.0
        %1490 = vmatmul.mubr.f32.gmra.mrb[0].mxu0 %v1288
        %v1491 = vpop.f32.mrb[0].mxu0
        %v1492 = vadd.f32 0.0, %v1491
        %v1493 = vpop.f32.mrb[0].mxu0
        %v1494 = vadd.f32 0.0, %v1493
        %1495 = vmatprep.mubr.f32.mxu0 0.0
        %1496 = vmatmul.mubr.f32.gmra.mrb[0].mxu0 %v1289
        %v1497 = vpop.f32.mrb[0].mxu0
        %v1498 = vadd.f32 0.0, %v1497
        %v1499 = vpop.f32.mrb[0].mxu0
        %v1500 = vadd.f32 0.0, %v1499
        %1501 = vmatprep.mubr.f32.mxu0 0.0
        %1502 = vmatmul.mubr.f32.gmra.mrb[0].mxu0 %v1290
        %v1503 = vpop.f32.mrb[0].mxu0
        %v1504 = vadd.f32 0.0, %v1503
        %v1505 = vpop.f32.mrb[0].mxu0
        %v1506 = vadd.f32 0.0, %v1505
        %1507 = vmatprep.mubr.f32.mxu0 0.0
        %1508 = vmatmul.mubr.f32.gmra.mrb[0].mxu0 %v1291
        %v1509 = vpop.f32.mrb[0].mxu0
        %v1510 = vadd.f32 0.0, %v1509
        %v1511 = vpop.f32.mrb[0].mxu0
        %v1512 = vadd.f32 0.0, %v1511
        %1513 = vmatprep.mubr.f32.mxu0 0.0
        %1514 = vmatmul.mubr.f32.gmra.mrb[0].mxu0 %v1292
        %v1515 = vpop.f32.mrb[0].mxu0
        %v1516 = vadd.f32 0.0, %v1515
        %v1517 = vpop.f32.mrb[0].mxu0
        %v1518 = vadd.f32 0.0, %v1517
        %1519 = vmatprep.mubr.f32.mxu0 0.0
        %1520 = vmatmul.mubr.f32.gmra.mrb[0].mxu0 %v1293
        %v1521 = vpop.f32.mrb[0].mxu0
        %v1522 = vadd.f32 0.0, %v1521
        %v1523 = vpop.f32.mrb[0].mxu0
        %v1524 = vadd.f32 0.0, %v1523
        %1525 = vmatprep.mubr.f32.mxu0 0.0
        %1526 = vmatmul.mubr.f32.gmra.mrb[0].mxu0 %v1294
        %v1527 = vpop.f32.mrb[0].mxu0
        %v1528 = vadd.f32 0.0, %v1527
        %v1529 = vpop.f32.mrb[0].mxu0
        %v1530 = vadd.f32 0.0, %v1529
        %1531 = vmatprep.mubr.f32.mxu0 0.0
        %1532 = vmatmul.mubr.f32.gmra.mrb[0].mxu0 %v1295
        %v1533 = vpop.f32.mrb[0].mxu0
        %v1534 = vadd.f32 0.0, %v1533
        %v1535 = vpop.f32.mrb[0].mxu0
        %v1536 = vadd.f32 0.0, %v1535
        %1537 = vmatprep.mubr.f32.mxu0 0.0
        %1538 = vmatmul.mubr.f32.gmra.mrb[0].mxu0 %v1296
        %v1539 = vpop.f32.mrb[0].mxu0
        %v1540 = vadd.f32 0.0, %v1539
        %v1541 = vpop.f32.mrb[0].mxu0
        %v1542 = vadd.f32 0.0, %v1541
        %1543 = vmatprep.mubr.f32.mxu0 0.0
        %1544 = vmatmul.mubr.f32.gmra.mrb[0].mxu0 %v1297
        %v1545 = vpop.f32.mrb[0].mxu0
        %v1546 = vadd.f32 0.0, %v1545
        %v1547 = vpop.f32.mrb[0].mxu0
        %v1548 = vadd.f32 0.0, %v1547
        %1549 = vmatprep.mubr.f32.mxu0 0.0
        %1550 = vmatmul.mubr.f32.gmra.mrb[0].mxu0 %v1298
        %v1551 = vpop.f32.mrb[0].mxu0
        %v1552 = vadd.f32 0.0, %v1551
        %v1553 = vpop.f32.mrb[0].mxu0
        %v1554 = vadd.f32 0.0, %v1553
        %1555 = vdwg.mxu0
        %v1556 = vmax.f32 %v1045, %v1051
        %v1557 = vmax.f32 %v1556, %v1057
        %v1558 = vmax.f32 %v1557, %v1063
        %v1559 = vmax.f32 %v1558, %v1069
        %v1560 = vmax.f32 %v1559, %v1075
        %v1561 = vmax.f32 %v1560, %v1081
        %v1562 = vmax.f32 %v1561, %v1087
        %v1563 = vmax.f32 %v1562, %v1093
        %v1564 = vmax.f32 %v1563, %v1099
        %v1565 = vmax.f32 %v1564, %v1105
        %v1566 = vmax.f32 %v1565, %v1111
        %v1567 = vmax.f32 %v1566, %v1117
        %v1568 = vmax.f32 %v1567, %v1123
        %v1569 = vmax.f32 %v1568, %v1129
        %v1570 = vmax.f32 %v1569, %v1135
        %v1571 = vmax.f32 %v1570, %v1141
        %v1572 = vmax.f32 %v1571, %v1147
        %v1573 = vmax.f32 %v1572, %v1153
        %v1574 = vmax.f32 %v1573, %v1159
        %v1575 = vmax.f32 %v1574, %v1165
        %v1576 = vmax.f32 %v1575, %v1171
        %v1577 = vmax.f32 %v1576, %v1177
        %v1578 = vmax.f32 %v1577, %v1183
        %v1579 = vmax.f32 %v1578, %v1189
        %v1580 = vmax.f32 %v1579, %v1195
        %v1581 = vmax.f32 %v1580, %v1201
        %v1582 = vmax.f32 %v1581, %v1207
        %v1583 = vmax.f32 %v1582, %v1213
        %v1584 = vmax.f32 %v1583, %v1219
        %v1585 = vmax.f32 %v1584, %v1225
        %v1586 = vmax.f32 %v1585, %v1231
        %v1587 = vrot.slane %v1586, 4
        %v1588 = vmax.f32 %v1586, %v1587
        %v1589 = vrot.slane %v1588, 2
        %v1590 = vmax.f32 %v1588, %v1589
        %v1591 = vrot.slane %v1590, 1
        %v1592 = vmax.f32 %v1590, %v1591
        %v1593 = vmax.f32 %v1047, %v1053
        %v1594 = vmax.f32 %v1593, %v1059
        %v1595 = vmax.f32 %v1594, %v1065
        %v1596 = vmax.f32 %v1595, %v1071
        %v1597 = vmax.f32 %v1596, %v1077
        %v1598 = vmax.f32 %v1597, %v1083
        %v1599 = vmax.f32 %v1598, %v1089
        %v1600 = vmax.f32 %v1599, %v1095
        %v1601 = vmax.f32 %v1600, %v1101
        %v1602 = vmax.f32 %v1601, %v1107
        %v1603 = vmax.f32 %v1602, %v1113
        %v1604 = vmax.f32 %v1603, %v1119
        %v1605 = vmax.f32 %v1604, %v1125
        %v1606 = vmax.f32 %v1605, %v1131
        %v1607 = vmax.f32 %v1606, %v1137
        %v1608 = vmax.f32 %v1607, %v1143
        %v1609 = vmax.f32 %v1608, %v1149
        %v1610 = vmax.f32 %v1609, %v1155
        %v1611 = vmax.f32 %v1610, %v1161
        %v1612 = vmax.f32 %v1611, %v1167
        %v1613 = vmax.f32 %v1612, %v1173
        %v1614 = vmax.f32 %v1613, %v1179
        %v1615 = vmax.f32 %v1614, %v1185
        %v1616 = vmax.f32 %v1615, %v1191
        %v1617 = vmax.f32 %v1616, %v1197
        %v1618 = vmax.f32 %v1617, %v1203
        %v1619 = vmax.f32 %v1618, %v1209
        %v1620 = vmax.f32 %v1619, %v1215
        %v1621 = vmax.f32 %v1620, %v1221
        %v1622 = vmax.f32 %v1621, %v1227
        %v1623 = vmax.f32 %v1622, %v1233
        %v1624 = vrot.slane %v1623, 4
        %v1625 = vmax.f32 %v1623, %v1624
        %v1626 = vrot.slane %v1625, 2
        %v1627 = vmax.f32 %v1625, %v1626
        %v1628 = vrot.slane %v1627, 1
        %v1629 = vmax.f32 %v1627, %v1628
        %v1630 = vmax.f32 %v1366, %v1372
        %v1631 = vmax.f32 %v1630, %v1378
        %v1632 = vmax.f32 %v1631, %v1384
        %v1633 = vmax.f32 %v1632, %v1390
        %v1634 = vmax.f32 %v1633, %v1396
        %v1635 = vmax.f32 %v1634, %v1402
        %v1636 = vmax.f32 %v1635, %v1408
        %v1637 = vmax.f32 %v1636, %v1414
        %v1638 = vmax.f32 %v1637, %v1420
        %v1639 = vmax.f32 %v1638, %v1426
        %v1640 = vmax.f32 %v1639, %v1432
        %v1641 = vmax.f32 %v1640, %v1438
        %v1642 = vmax.f32 %v1641, %v1444
        %v1643 = vmax.f32 %v1642, %v1450
        %v1644 = vmax.f32 %v1643, %v1456
        %v1645 = vmax.f32 %v1644, %v1462
        %v1646 = vmax.f32 %v1645, %v1468
        %v1647 = vmax.f32 %v1646, %v1474
        %v1648 = vmax.f32 %v1647, %v1480
        %v1649 = vmax.f32 %v1648, %v1486
        %v1650 = vmax.f32 %v1649, %v1492
        %v1651 = vmax.f32 %v1650, %v1498
        %v1652 = vmax.f32 %v1651, %v1504
        %v1653 = vmax.f32 %v1652, %v1510
        %v1654 = vmax.f32 %v1653, %v1516
        %v1655 = vmax.f32 %v1654, %v1522
        %v1656 = vmax.f32 %v1655, %v1528
        %v1657 = vmax.f32 %v1656, %v1534
        %v1658 = vmax.f32 %v1657, %v1540
        %v1659 = vmax.f32 %v1658, %v1546
        %v1660 = vmax.f32 %v1659, %v1552
        %v1661 = vrot.slane %v1660, 4
        %v1662 = vmax.f32 %v1660, %v1661
        %v1663 = vrot.slane %v1662, 2
        %v1664 = vmax.f32 %v1662, %v1663
        %v1665 = vrot.slane %v1664, 1
        %v1666 = vmax.f32 %v1664, %v1665
        %v1667 = vmax.f32 %v1368, %v1374
        %v1668 = vmax.f32 %v1667, %v1380
        %v1669 = vmax.f32 %v1668, %v1386
        %v1670 = vmax.f32 %v1669, %v1392
        %v1671 = vmax.f32 %v1670, %v1398
        %v1672 = vmax.f32 %v1671, %v1404
        %v1673 = vmax.f32 %v1672, %v1410
        %v1674 = vmax.f32 %v1673, %v1416
        %v1675 = vmax.f32 %v1674, %v1422
        %v1676 = vmax.f32 %v1675, %v1428
        %v1677 = vmax.f32 %v1676, %v1434
        %v1678 = vmax.f32 %v1677, %v1440
        %v1679 = vmax.f32 %v1678, %v1446
        %v1680 = vmax.f32 %v1679, %v1452
        %v1681 = vmax.f32 %v1680, %v1458
        %v1682 = vmax.f32 %v1681, %v1464
        %v1683 = vmax.f32 %v1682, %v1470
        %v1684 = vmax.f32 %v1683, %v1476
        %v1685 = vmax.f32 %v1684, %v1482
        %v1686 = vmax.f32 %v1685, %v1488
        %v1687 = vmax.f32 %v1686, %v1494
        %v1688 = vmax.f32 %v1687, %v1500
        %v1689 = vmax.f32 %v1688, %v1506
        %v1690 = vmax.f32 %v1689, %v1512
        %v1691 = vmax.f32 %v1690, %v1518
        %v1692 = vmax.f32 %v1691, %v1524
        %v1693 = vmax.f32 %v1692, %v1530
        %v1694 = vmax.f32 %v1693, %v1536
        %v1695 = vmax.f32 %v1694, %v1542
        %v1696 = vmax.f32 %v1695, %v1548
        %v1697 = vmax.f32 %v1696, %v1554
        %v1698 = vrot.slane %v1697, 4
        %v1699 = vmax.f32 %v1697, %v1698
        %v1700 = vrot.slane %v1699, 2
        %v1701 = vmax.f32 %v1699, %v1700
        %v1702 = vrot.slane %v1701, 1
        %v1703 = vmax.f32 %v1701, %v1702
        %v1704 = vsub.f32 %v1045, %v1592
        %v1705 = vsub.f32 %v1047, %v1629
        %v1706 = vsub.f32 %v1051, %v1592
        %v1707 = vsub.f32 %v1053, %v1629
        %v1708 = vsub.f32 %v1057, %v1592
        %v1709 = vsub.f32 %v1059, %v1629
        %v1710 = vsub.f32 %v1063, %v1592
        %v1711 = vsub.f32 %v1065, %v1629
        %v1712 = vsub.f32 %v1069, %v1592
        %v1713 = vsub.f32 %v1071, %v1629
        %v1714 = vsub.f32 %v1075, %v1592
        %v1715 = vsub.f32 %v1077, %v1629
        %v1716 = vsub.f32 %v1081, %v1592
        %v1717 = vsub.f32 %v1083, %v1629
        %v1718 = vsub.f32 %v1087, %v1592
        %v1719 = vsub.f32 %v1089, %v1629
        %v1720 = vsub.f32 %v1093, %v1592
        %v1721 = vsub.f32 %v1095, %v1629
        %v1722 = vsub.f32 %v1099, %v1592
        %v1723 = vsub.f32 %v1101, %v1629
        %v1724 = vsub.f32 %v1105, %v1592
        %v1725 = vsub.f32 %v1107, %v1629
        %v1726 = vsub.f32 %v1111, %v1592
        %v1727 = vsub.f32 %v1113, %v1629
        %v1728 = vsub.f32 %v1117, %v1592
        %v1729 = vsub.f32 %v1119, %v1629
        %v1730 = vsub.f32 %v1123, %v1592
        %v1731 = vsub.f32 %v1125, %v1629
        %v1732 = vsub.f32 %v1129, %v1592
        %v1733 = vsub.f32 %v1131, %v1629
        %v1734 = vsub.f32 %v1135, %v1592
        %v1735 = vsub.f32 %v1137, %v1629
        %v1736 = vsub.f32 %v1141, %v1592
        %v1737 = vsub.f32 %v1143, %v1629
        %v1738 = vsub.f32 %v1147, %v1592
        %v1739 = vsub.f32 %v1149, %v1629
        %v1740 = vsub.f32 %v1153, %v1592
        %v1741 = vsub.f32 %v1155, %v1629
        %v1742 = vsub.f32 %v1159, %v1592
        %v1743 = vsub.f32 %v1161, %v1629
        %v1744 = vsub.f32 %v1165, %v1592
        %v1745 = vsub.f32 %v1167, %v1629
        %v1746 = vsub.f32 %v1171, %v1592
        %v1747 = vsub.f32 %v1173, %v1629
        %v1748 = vsub.f32 %v1177, %v1592
        %v1749 = vsub.f32 %v1179, %v1629
        %v1750 = vsub.f32 %v1183, %v1592
        %v1751 = vsub.f32 %v1185, %v1629
        %v1752 = vsub.f32 %v1189, %v1592
        %v1753 = vsub.f32 %v1191, %v1629
        %v1754 = vsub.f32 %v1195, %v1592
        %v1755 = vsub.f32 %v1197, %v1629
        %v1756 = vsub.f32 %v1201, %v1592
        %v1757 = vsub.f32 %v1203, %v1629
        %v1758 = vsub.f32 %v1207, %v1592
        %v1759 = vsub.f32 %v1209, %v1629
        %v1760 = vsub.f32 %v1213, %v1592
        %v1761 = vsub.f32 %v1215, %v1629
        %v1762 = vsub.f32 %v1219, %v1592
        %v1763 = vsub.f32 %v1221, %v1629
        %v1764 = vsub.f32 %v1225, %v1592
        %v1765 = vsub.f32 %v1227, %v1629
        %v1766 = vsub.f32 %v1231, %v1592
        %v1767 = vsub.f32 %v1233, %v1629
        %v1768 = vsub.f32 %v1366, %v1666
        %v1769 = vsub.f32 %v1368, %v1703
        %v1770 = vsub.f32 %v1372, %v1666
        %v1771 = vsub.f32 %v1374, %v1703
        %v1772 = vsub.f32 %v1378, %v1666
        %v1773 = vsub.f32 %v1380, %v1703
        %v1774 = vsub.f32 %v1384, %v1666
        %v1775 = vsub.f32 %v1386, %v1703
        %v1776 = vsub.f32 %v1390, %v1666
        %v1777 = vsub.f32 %v1392, %v1703
        %v1778 = vsub.f32 %v1396, %v1666
        %v1779 = vsub.f32 %v1398, %v1703
        %v1780 = vsub.f32 %v1402, %v1666
        %v1781 = vsub.f32 %v1404, %v1703
        %v1782 = vsub.f32 %v1408, %v1666
        %v1783 = vsub.f32 %v1410, %v1703
        %v1784 = vsub.f32 %v1414, %v1666
        %v1785 = vsub.f32 %v1416, %v1703
        %v1786 = vsub.f32 %v1420, %v1666
        %v1787 = vsub.f32 %v1422, %v1703
        %v1788 = vsub.f32 %v1426, %v1666
        %v1789 = vsub.f32 %v1428, %v1703
        %v1790 = vsub.f32 %v1432, %v1666
        %v1791 = vsub.f32 %v1434, %v1703
        %v1792 = vsub.f32 %v1438, %v1666
        %v1793 = vsub.f32 %v1440, %v1703
        %v1794 = vsub.f32 %v1444, %v1666
        %v1795 = vsub.f32 %v1446, %v1703
        %v1796 = vsub.f32 %v1450, %v1666
        %v1797 = vsub.f32 %v1452, %v1703
        %v1798 = vsub.f32 %v1456, %v1666
        %v1799 = vsub.f32 %v1458, %v1703
        %v1800 = vsub.f32 %v1462, %v1666
        %v1801 = vsub.f32 %v1464, %v1703
        %v1802 = vsub.f32 %v1468, %v1666
        %v1803 = vsub.f32 %v1470, %v1703
        %v1804 = vsub.f32 %v1474, %v1666
        %v1805 = vsub.f32 %v1476, %v1703
        %v1806 = vsub.f32 %v1480, %v1666
        %v1807 = vsub.f32 %v1482, %v1703
        %v1808 = vsub.f32 %v1486, %v1666
        %v1809 = vsub.f32 %v1488, %v1703
        %v1810 = vsub.f32 %v1492, %v1666
        %v1811 = vsub.f32 %v1494, %v1703
        %v1812 = vsub.f32 %v1498, %v1666
        %v1813 = vsub.f32 %v1500, %v1703
        %v1814 = vsub.f32 %v1504, %v1666
        %v1815 = vsub.f32 %v1506, %v1703
        %v1816 = vsub.f32 %v1510, %v1666
        %v1817 = vsub.f32 %v1512, %v1703
        %v1818 = vsub.f32 %v1516, %v1666
        %v1819 = vsub.f32 %v1518, %v1703
        %v1820 = vsub.f32 %v1522, %v1666
        %v1821 = vsub.f32 %v1524, %v1703
        %v1822 = vsub.f32 %v1528, %v1666
        %v1823 = vsub.f32 %v1530, %v1703
        %v1824 = vsub.f32 %v1534, %v1666
        %v1825 = vsub.f32 %v1536, %v1703
        %v1826 = vsub.f32 %v1540, %v1666
        %v1827 = vsub.f32 %v1542, %v1703
        %v1828 = vsub.f32 %v1546, %v1666
        %v1829 = vsub.f32 %v1548, %v1703
        %v1830 = vsub.f32 %v1552, %v1666
        %v1831 = vsub.f32 %v1554, %v1703
        %v1832 = vmul.f32 %v1704, 1.442695
        %v1833 = vpow.pop %v1832
        %v1834 = vmul.f32 %v1705, 1.442695
        %v1835 = vpow.pop %v1834
        %v1836 = vmul.f32 %v1706, 1.442695
        %v1837 = vpow.pop %v1836
        %v1838 = vmul.f32 %v1707, 1.442695
        %v1839 = vpow.pop %v1838
        %v1840 = vmul.f32 %v1708, 1.442695
        %v1841 = vpow.pop %v1840
        %v1842 = vmul.f32 %v1709, 1.442695
        %v1843 = vpow.pop %v1842
        %v1844 = vmul.f32 %v1710, 1.442695
        %v1845 = vpow.pop %v1844
        %v1846 = vmul.f32 %v1711, 1.442695
        %v1847 = vpow.pop %v1846
        %v1848 = vmul.f32 %v1712, 1.442695
        %v1849 = vpow.pop %v1848
        %v1850 = vmul.f32 %v1713, 1.442695
        %v1851 = vpow.pop %v1850
        %v1852 = vmul.f32 %v1714, 1.442695
        %v1853 = vpow.pop %v1852
        %v1854 = vmul.f32 %v1715, 1.442695
        %v1855 = vpow.pop %v1854
        %v1856 = vmul.f32 %v1716, 1.442695
        %v1857 = vpow.pop %v1856
        %v1858 = vmul.f32 %v1717, 1.442695
        %v1859 = vpow.pop %v1858
        %v1860 = vmul.f32 %v1718, 1.442695
        %v1861 = vpow.pop %v1860
        %v1862 = vmul.f32 %v1719, 1.442695
        %v1863 = vpow.pop %v1862
        %v1864 = vmul.f32 %v1720, 1.442695
        %v1865 = vpow.pop %v1864
        %v1866 = vmul.f32 %v1721, 1.442695
        %v1867 = vpow.pop %v1866
        %v1868 = vmul.f32 %v1722, 1.442695
        %v1869 = vpow.pop %v1868
        %v1870 = vmul.f32 %v1723, 1.442695
        %v1871 = vpow.pop %v1870
        %v1872 = vmul.f32 %v1724, 1.442695
        %v1873 = vpow.pop %v1872
        %v1874 = vmul.f32 %v1725, 1.442695
        %v1875 = vpow.pop %v1874
        %v1876 = vmul.f32 %v1726, 1.442695
        %v1877 = vpow.pop %v1876
        %v1878 = vmul.f32 %v1727, 1.442695
        %v1879 = vpow.pop %v1878
        %v1880 = vmul.f32 %v1728, 1.442695
        %v1881 = vpow.pop %v1880
        %v1882 = vmul.f32 %v1729, 1.442695
        %v1883 = vpow.pop %v1882
        %v1884 = vmul.f32 %v1730, 1.442695
        %v1885 = vpow.pop %v1884
        %v1886 = vmul.f32 %v1731, 1.442695
        %v1887 = vpow.pop %v1886
        %v1888 = vmul.f32 %v1732, 1.442695
        %v1889 = vpow.pop %v1888
        %v1890 = vmul.f32 %v1733, 1.442695
        %v1891 = vpow.pop %v1890
        %v1892 = vmul.f32 %v1734, 1.442695
        %v1893 = vpow.pop %v1892
        %v1894 = vmul.f32 %v1735, 1.442695
        %v1895 = vpow.pop %v1894
        %v1896 = vmul.f32 %v1736, 1.442695
        %v1897 = vpow.pop %v1896
        %v1898 = vmul.f32 %v1737, 1.442695
        %v1899 = vpow.pop %v1898
        %v1900 = vmul.f32 %v1738, 1.442695
        %v1901 = vpow.pop %v1900
        %v1902 = vmul.f32 %v1739, 1.442695
        %v1903 = vpow.pop %v1902
        %v1904 = vmul.f32 %v1740, 1.442695
        %v1905 = vpow.pop %v1904
        %v1906 = vmul.f32 %v1741, 1.442695
        %v1907 = vpow.pop %v1906
        %v1908 = vmul.f32 %v1742, 1.442695
        %v1909 = vpow.pop %v1908
        %v1910 = vmul.f32 %v1743, 1.442695
        %v1911 = vpow.pop %v1910
        %v1912 = vmul.f32 %v1744, 1.442695
        %v1913 = vpow.pop %v1912
        %v1914 = vmul.f32 %v1745, 1.442695
        %v1915 = vpow.pop %v1914
        %v1916 = vmul.f32 %v1746, 1.442695
        %v1917 = vpow.pop %v1916
        %v1918 = vmul.f32 %v1747, 1.442695
        %v1919 = vpow.pop %v1918
        %v1920 = vmul.f32 %v1748, 1.442695
        %v1921 = vpow.pop %v1920
        %v1922 = vmul.f32 %v1749, 1.442695
        %v1923 = vpow.pop %v1922
        %v1924 = vmul.f32 %v1750, 1.442695
        %v1925 = vpow.pop %v1924
        %v1926 = vmul.f32 %v1751, 1.442695
        %v1927 = vpow.pop %v1926
        %v1928 = vmul.f32 %v1752, 1.442695
        %v1929 = vpow.pop %v1928
        %v1930 = vmul.f32 %v1753, 1.442695
        %v1931 = vpow.pop %v1930
        %v1932 = vmul.f32 %v1754, 1.442695
        %v1933 = vpow.pop %v1932
        %v1934 = vmul.f32 %v1755, 1.442695
        %v1935 = vpow.pop %v1934
        %v1936 = vmul.f32 %v1756, 1.442695
        %v1937 = vpow.pop %v1936
        %v1938 = vmul.f32 %v1757, 1.442695
        %v1939 = vpow.pop %v1938
        %v1940 = vmul.f32 %v1758, 1.442695
        %v1941 = vpow.pop %v1940
        %v1942 = vmul.f32 %v1759, 1.442695
        %v1943 = vpow.pop %v1942
        %v1944 = vmul.f32 %v1760, 1.442695
        %v1945 = vpow.pop %v1944
        %v1946 = vmul.f32 %v1761, 1.442695
        %v1947 = vpow.pop %v1946
        %v1948 = vmul.f32 %v1762, 1.442695
        %v1949 = vpow.pop %v1948
        %v1950 = vmul.f32 %v1763, 1.442695
        %v1951 = vpow.pop %v1950
        %v1952 = vmul.f32 %v1764, 1.442695
        %v1953 = vpow.pop %v1952
        %v1954 = vmul.f32 %v1765, 1.442695
        %v1955 = vpow.pop %v1954
        %v1956 = vmul.f32 %v1766, 1.442695
        %v1957 = vpow.pop %v1956
        %v1958 = vmul.f32 %v1767, 1.442695
        %v1959 = vpow.pop %v1958
        %v1960 = vmul.f32 %v1768, 1.442695
        %v1961 = vpow.pop %v1960
        %v1962 = vmul.f32 %v1769, 1.442695
        %v1963 = vpow.pop %v1962
        %v1964 = vmul.f32 %v1770, 1.442695
        %v1965 = vpow.pop %v1964
        %v1966 = vmul.f32 %v1771, 1.442695
        %v1967 = vpow.pop %v1966
        %v1968 = vmul.f32 %v1772, 1.442695
        %v1969 = vpow.pop %v1968
        %v1970 = vmul.f32 %v1773, 1.442695
        %v1971 = vpow.pop %v1970
        %v1972 = vmul.f32 %v1774, 1.442695
        %v1973 = vpow.pop %v1972
        %v1974 = vmul.f32 %v1775, 1.442695
        %v1975 = vpow.pop %v1974
        %v1976 = vmul.f32 %v1776, 1.442695
        %v1977 = vpow.pop %v1976
        %v1978 = vmul.f32 %v1777, 1.442695
        %v1979 = vpow.pop %v1978
        %v1980 = vmul.f32 %v1778, 1.442695
        %v1981 = vpow.pop %v1980
        %v1982 = vmul.f32 %v1779, 1.442695
        %v1983 = vpow.pop %v1982
        %v1984 = vmul.f32 %v1780, 1.442695
        %v1985 = vpow.pop %v1984
        %v1986 = vmul.f32 %v1781, 1.442695
        %v1987 = vpow.pop %v1986
        %v1988 = vmul.f32 %v1782, 1.442695
        %v1989 = vpow.pop %v1988
        %v1990 = vmul.f32 %v1783, 1.442695
        %v1991 = vpow.pop %v1990
        %v1992 = vmul.f32 %v1784, 1.442695
        %v1993 = vpow.pop %v1992
        %v1994 = vmul.f32 %v1785, 1.442695
        %v1995 = vpow.pop %v1994
        %v1996 = vmul.f32 %v1786, 1.442695
        %v1997 = vpow.pop %v1996
        %v1998 = vmul.f32 %v1787, 1.442695
        %v1999 = vpow.pop %v1998
        %v2000 = vmul.f32 %v1788, 1.442695
        %v2001 = vpow.pop %v2000
        %v2002 = vmul.f32 %v1789, 1.442695
        %v2003 = vpow.pop %v2002
        %v2004 = vmul.f32 %v1790, 1.442695
        %v2005 = vpow.pop %v2004
        %v2006 = vmul.f32 %v1791, 1.442695
        %v2007 = vpow.pop %v2006
        %v2008 = vmul.f32 %v1792, 1.442695
        %v2009 = vpow.pop %v2008
        %v2010 = vmul.f32 %v1793, 1.442695
        %v2011 = vpow.pop %v2010
        %v2012 = vmul.f32 %v1794, 1.442695
        %v2013 = vpow.pop %v2012
        %v2014 = vmul.f32 %v1795, 1.442695
        %v2015 = vpow.pop %v2014
        %v2016 = vmul.f32 %v1796, 1.442695
        %v2017 = vpow.pop %v2016
        %v2018 = vmul.f32 %v1797, 1.442695
        %v2019 = vpow.pop %v2018
        %v2020 = vmul.f32 %v1798, 1.442695
        %v2021 = vpow.pop %v2020
        %v2022 = vmul.f32 %v1799, 1.442695
        %v2023 = vpow.pop %v2022
        %v2024 = vmul.f32 %v1800, 1.442695
        %v2025 = vpow.pop %v2024
        %v2026 = vmul.f32 %v1801, 1.442695
        %v2027 = vpow.pop %v2026
        %v2028 = vmul.f32 %v1802, 1.442695
        %v2029 = vpow.pop %v2028
        %v2030 = vmul.f32 %v1803, 1.442695
        %v2031 = vpow.pop %v2030
        %v2032 = vmul.f32 %v1804, 1.442695
        %v2033 = vpow.pop %v2032
        %v2034 = vmul.f32 %v1805, 1.442695
        %v2035 = vpow.pop %v2034
        %v2036 = vmul.f32 %v1806, 1.442695
        %v2037 = vpow.pop %v2036
        %v2038 = vmul.f32 %v1807, 1.442695
        %v2039 = vpow.pop %v2038
        %v2040 = vmul.f32 %v1808, 1.442695
        %v2041 = vpow.pop %v2040
        %v2042 = vmul.f32 %v1809, 1.442695
        %v2043 = vpow.pop %v2042
        %v2044 = vmul.f32 %v1810, 1.442695
        %v2045 = vpow.pop %v2044
        %v2046 = vmul.f32 %v1811, 1.442695
        %v2047 = vpow.pop %v2046
        %v2048 = vmul.f32 %v1812, 1.442695
        %v2049 = vpow.pop %v2048
        %v2050 = vmul.f32 %v1813, 1.442695
        %v2051 = vpow.pop %v2050
        %v2052 = vmul.f32 %v1814, 1.442695
        %v2053 = vpow.pop %v2052
        %v2054 = vmul.f32 %v1815, 1.442695
        %v2055 = vpow.pop %v2054
        %v2056 = vmul.f32 %v1816, 1.442695
        %v2057 = vpow.pop %v2056
        %v2058 = vmul.f32 %v1817, 1.442695
        %v2059 = vpow.pop %v2058
        %v2060 = vmul.f32 %v1818, 1.442695
        %v2061 = vpow.pop %v2060
        %v2062 = vmul.f32 %v1819, 1.442695
        %v2063 = vpow.pop %v2062
        %v2064 = vmul.f32 %v1820, 1.442695
        %v2065 = vpow.pop %v2064
        %v2066 = vmul.f32 %v1821, 1.442695
        %v2067 = vpow.pop %v2066
        %v2068 = vmul.f32 %v1822, 1.442695
        %v2069 = vpow.pop %v2068
        %v2070 = vmul.f32 %v1823, 1.442695
        %v2071 = vpow.pop %v2070
        %v2072 = vmul.f32 %v1824, 1.442695
        %v2073 = vpow.pop %v2072
        %v2074 = vmul.f32 %v1825, 1.442695
        %v2075 = vpow.pop %v2074
        %v2076 = vmul.f32 %v1826, 1.442695
        %v2077 = vpow.pop %v2076
        %v2078 = vmul.f32 %v1827, 1.442695
        %v2079 = vpow.pop %v2078
        %v2080 = vmul.f32 %v1828, 1.442695
        %v2081 = vpow.pop %v2080
        %v2082 = vmul.f32 %v1829, 1.442695
        %v2083 = vpow.pop %v2082
        %v2084 = vmul.f32 %v1830, 1.442695
        %v2085 = vpow.pop %v2084
        %v2086 = vmul.f32 %v1831, 1.442695
        %v2087 = vpow.pop %v2086
        %v2088 = vadd.f32 %v1833, %v1837
        %v2089 = vadd.f32 %v2088, %v1841
        %v2090 = vadd.f32 %v2089, %v1845
        %v2091 = vadd.f32 %v2090, %v1849
        %v2092 = vadd.f32 %v2091, %v1853
        %v2093 = vadd.f32 %v2092, %v1857
        %v2094 = vadd.f32 %v2093, %v1861
        %v2095 = vadd.f32 %v2094, %v1865
        %v2096 = vadd.f32 %v2095, %v1869
        %v2097 = vadd.f32 %v2096, %v1873
        %v2098 = vadd.f32 %v2097, %v1877
        %v2099 = vadd.f32 %v2098, %v1881
        %v2100 = vadd.f32 %v2099, %v1885
        %v2101 = vadd.f32 %v2100, %v1889
        %v2102 = vadd.f32 %v2101, %v1893
        %v2103 = vadd.f32 %v2102, %v1897
        %v2104 = vadd.f32 %v2103, %v1901
        %v2105 = vadd.f32 %v2104, %v1905
        %v2106 = vadd.f32 %v2105, %v1909
        %v2107 = vadd.f32 %v2106, %v1913
        %v2108 = vadd.f32 %v2107, %v1917
        %v2109 = vadd.f32 %v2108, %v1921
        %v2110 = vadd.f32 %v2109, %v1925
        %v2111 = vadd.f32 %v2110, %v1929
        %v2112 = vadd.f32 %v2111, %v1933
        %v2113 = vadd.f32 %v2112, %v1937
        %v2114 = vadd.f32 %v2113, %v1941
        %v2115 = vadd.f32 %v2114, %v1945
        %v2116 = vadd.f32 %v2115, %v1949
        %v2117 = vadd.f32 %v2116, %v1953
        %v2118 = vadd.f32 %v2117, %v1957
        %v2119 = vrot.slane %v2118, 4
        %v2120 = vadd.f32 %v2118, %v2119
        %v2121 = vrot.slane %v2120, 2
        %v2122 = vadd.f32 %v2120, %v2121
        %v2123 = vrot.slane %v2122, 1
        %v2124 = vadd.f32 %v2122, %v2123
        %v2125 = vadd.f32 %v1835, %v1839
        %v2126 = vadd.f32 %v2125, %v1843
        %v2127 = vadd.f32 %v2126, %v1847
        %v2128 = vadd.f32 %v2127, %v1851
        %v2129 = vadd.f32 %v2128, %v1855
        %v2130 = vadd.f32 %v2129, %v1859
        %v2131 = vadd.f32 %v2130, %v1863
        %v2132 = vadd.f32 %v2131, %v1867
        %v2133 = vadd.f32 %v2132, %v1871
        %v2134 = vadd.f32 %v2133, %v1875
        %v2135 = vadd.f32 %v2134, %v1879
        %v2136 = vadd.f32 %v2135, %v1883
        %v2137 = vadd.f32 %v2136, %v1887
        %v2138 = vadd.f32 %v2137, %v1891
        %v2139 = vadd.f32 %v2138, %v1895
        %v2140 = vadd.f32 %v2139, %v1899
        %v2141 = vadd.f32 %v2140, %v1903
        %v2142 = vadd.f32 %v2141, %v1907
        %v2143 = vadd.f32 %v2142, %v1911
        %v2144 = vadd.f32 %v2143, %v1915
        %v2145 = vadd.f32 %v2144, %v1919
        %v2146 = vadd.f32 %v2145, %v1923
        %v2147 = vadd.f32 %v2146, %v1927
        %v2148 = vadd.f32 %v2147, %v1931
        %v2149 = vadd.f32 %v2148, %v1935
        %v2150 = vadd.f32 %v2149, %v1939
        %v2151 = vadd.f32 %v2150, %v1943
        %v2152 = vadd.f32 %v2151, %v1947
        %v2153 = vadd.f32 %v2152, %v1951
        %v2154 = vadd.f32 %v2153, %v1955
        %v2155 = vadd.f32 %v2154, %v1959
        %v2156 = vrot.slane %v2155, 4
        %v2157 = vadd.f32 %v2155, %v2156
        %v2158 = vrot.slane %v2157, 2
        %v2159 = vadd.f32 %v2157, %v2158
        %v2160 = vrot.slane %v2159, 1
        %v2161 = vadd.f32 %v2159, %v2160
        %v2162 = vadd.f32 %v1961, %v1965
        %v2163 = vadd.f32 %v2162, %v1969
        %v2164 = vadd.f32 %v2163, %v1973
        %v2165 = vadd.f32 %v2164, %v1977
        %v2166 = vadd.f32 %v2165, %v1981
        %v2167 = vadd.f32 %v2166, %v1985
        %v2168 = vadd.f32 %v2167, %v1989
        %v2169 = vadd.f32 %v2168, %v1993
        %v2170 = vadd.f32 %v2169, %v1997
        %v2171 = vadd.f32 %v2170, %v2001
        %v2172 = vadd.f32 %v2171, %v2005
        %v2173 = vadd.f32 %v2172, %v2009
        %v2174 = vadd.f32 %v2173, %v2013
        %v2175 = vadd.f32 %v2174, %v2017
        %v2176 = vadd.f32 %v2175, %v2021
        %v2177 = vadd.f32 %v2176, %v2025
        %v2178 = vadd.f32 %v2177, %v2029
        %v2179 = vadd.f32 %v2178, %v2033
        %v2180 = vadd.f32 %v2179, %v2037
        %v2181 = vadd.f32 %v2180, %v2041
        %v2182 = vadd.f32 %v2181, %v2045
        %v2183 = vadd.f32 %v2182, %v2049
        %v2184 = vadd.f32 %v2183, %v2053
        %v2185 = vadd.f32 %v2184, %v2057
        %v2186 = vadd.f32 %v2185, %v2061
        %v2187 = vadd.f32 %v2186, %v2065
        %v2188 = vadd.f32 %v2187, %v2069
        %v2189 = vadd.f32 %v2188, %v2073
        %v2190 = vadd.f32 %v2189, %v2077
        %v2191 = vadd.f32 %v2190, %v2081
        %v2192 = vadd.f32 %v2191, %v2085
        %v2193 = vrot.slane %v2192, 4
        %v2194 = vadd.f32 %v2192, %v2193
        %v2195 = vrot.slane %v2194, 2
        %v2196 = vadd.f32 %v2194, %v2195
        %v2197 = vrot.slane %v2196, 1
        %v2198 = vadd.f32 %v2196, %v2197
        %v2199 = vadd.f32 %v1963, %v1967
        %v2200 = vadd.f32 %v2199, %v1971
        %v2201 = vadd.f32 %v2200, %v1975
        %v2202 = vadd.f32 %v2201, %v1979
        %v2203 = vadd.f32 %v2202, %v1983
        %v2204 = vadd.f32 %v2203, %v1987
        %v2205 = vadd.f32 %v2204, %v1991
        %v2206 = vadd.f32 %v2205, %v1995
        %v2207 = vadd.f32 %v2206, %v1999
        %v2208 = vadd.f32 %v2207, %v2003
        %v2209 = vadd.f32 %v2208, %v2007
        %v2210 = vadd.f32 %v2209, %v2011
        %v2211 = vadd.f32 %v2210, %v2015
        %v2212 = vadd.f32 %v2211, %v2019
        %v2213 = vadd.f32 %v2212, %v2023
        %v2214 = vadd.f32 %v2213, %v2027
        %v2215 = vadd.f32 %v2214, %v2031
        %v2216 = vadd.f32 %v2215, %v2035
        %v2217 = vadd.f32 %v2216, %v2039
        %v2218 = vadd.f32 %v2217, %v2043
        %v2219 = vadd.f32 %v2218, %v2047
        %v2220 = vadd.f32 %v2219, %v2051
        %v2221 = vadd.f32 %v2220, %v2055
        %v2222 = vadd.f32 %v2221, %v2059
        %v2223 = vadd.f32 %v2222, %v2063
        %v2224 = vadd.f32 %v2223, %v2067
        %v2225 = vadd.f32 %v2224, %v2071
        %v2226 = vadd.f32 %v2225, %v2075
        %v2227 = vadd.f32 %v2226, %v2079
        %v2228 = vadd.f32 %v2227, %v2083
        %v2229 = vadd.f32 %v2228, %v2087
        %v2230 = vrot.slane %v2229, 4
        %v2231 = vadd.f32 %v2229, %v2230
        %v2232 = vrot.slane %v2231, 2
        %v2233 = vadd.f32 %v2231, %v2232
        %v2234 = vrot.slane %v2233, 1
        %v2235 = vadd.f32 %v2233, %v2234
        %v2236 = vrcp.pop %v2124
        %v2237 = vrcp.pop %v2161
        %v2238 = vrcp.pop %v2198
        %v2239 = vrcp.pop %v2235
        %v2240 = vstv %s721
        %v2241 = vmul.f32 %v2240, %v2236
        %v2242 = vmul.f32 %v2240, %v2237
        %v2243 = vmul.f32 %v2240, %v2238
        %v2244 = vmul.f32 %v2240, %v2239
        %2245 = vmatprep.subr.mxu0 %v1835
        %2246 = vmatpush1.msra.mxu0 %v1833
        %2247 = vmatprep.subr.mxu0 %v1839
        %2248 = vmatpush1.msra.mxu0 %v1837
        %2249 = vmatprep.subr.mxu0 %v1843
        %2250 = vmatpush1.msra.mxu0 %v1841
        %2251 = vmatprep.subr.mxu0 %v1847
        %2252 = vmatpush1.msra.mxu0 %v1845
        %2253 = vmatprep.subr.mxu0 %v1851
        %2254 = vmatpush1.msra.mxu0 %v1849
        %2255 = vmatprep.subr.mxu0 %v1855
        %2256 = vmatpush1.msra.mxu0 %v1853
        %2257 = vmatprep.subr.mxu0 %v1859
        %2258 = vmatpush1.msra.mxu0 %v1857
        %2259 = vmatprep.subr.mxu0 %v1863
        %2260 = vmatpush1.msra.mxu0 %v1861
        %2261 = vmatprep.subr.mxu0 %v1867
        %2262 = vmatpush1.msra.mxu0 %v1865
        %2263 = vmatprep.subr.mxu0 %v1871
        %2264 = vmatpush1.msra.mxu0 %v1869
        %2265 = vmatprep.subr.mxu0 %v1875
        %2266 = vmatpush1.msra.mxu0 %v1873
        %2267 = vmatprep.subr.mxu0 %v1879
        %2268 = vmatpush1.msra.mxu0 %v1877
        %2269 = vmatprep.subr.mxu0 %v1883
        %2270 = vmatpush1.msra.mxu0 %v1881
        %2271 = vmatprep.subr.mxu0 %v1887
        %2272 = vmatpush1.msra.mxu0 %v1885
        %2273 = vmatprep.subr.mxu0 %v1891
        %2274 = vmatpush1.msra.mxu0 %v1889
        %2275 = vmatprep.subr.mxu0 %v1895
        %2276 = vmatpush1.msra.mxu0 %v1893
        %2277 = vmatprep.subr.mxu0 %v1899
        %2278 = vmatpush1.msra.mxu0 %v1897
        %2279 = vmatprep.subr.mxu0 %v1903
        %2280 = vmatpush1.msra.mxu0 %v1901
        %2281 = vmatprep.subr.mxu0 %v1907
        %2282 = vmatpush1.msra.mxu0 %v1905
        %2283 = vmatprep.subr.mxu0 %v1911
        %2284 = vmatpush1.msra.mxu0 %v1909
        %2285 = vmatprep.subr.mxu0 %v1915
        %2286 = vmatpush1.msra.mxu0 %v1913
        %2287 = vmatprep.subr.mxu0 %v1919
        %2288 = vmatpush1.msra.mxu0 %v1917
        %2289 = vmatprep.subr.mxu0 %v1923
        %2290 = vmatpush1.msra.mxu0 %v1921
        %2291 = vmatprep.subr.mxu0 %v1927
        %2292 = vmatpush1.msra.mxu0 %v1925
        %2293 = vmatprep.subr.mxu0 %v1931
        %2294 = vmatpush1.msra.mxu0 %v1929
        %2295 = vmatprep.subr.mxu0 %v1935
        %2296 = vmatpush1.msra.mxu0 %v1933
        %2297 = vmatprep.subr.mxu0 %v1939
        %2298 = vmatpush1.msra.mxu0 %v1937
        %2299 = vmatprep.subr.mxu0 %v1943
        %2300 = vmatpush1.msra.mxu0 %v1941
        %2301 = vmatprep.subr.mxu0 %v1947
        %2302 = vmatpush1.msra.mxu0 %v1945
        %2303 = vmatprep.subr.mxu0 %v1951
        %2304 = vmatpush1.msra.mxu0 %v1949
        %2305 = vmatprep.subr.mxu0 %v1955
        %2306 = vmatpush1.msra.mxu0 %v1953
        %2307 = vmatprep.subr.mxu0 %v1959
        %2308 = vmatpush1.msra.mxu0 %v1957
        %2309 = vmatprep.mubr.f32.mxu0 %v533
        %2310 = vmatmul.mubr.f32.gmra.mrb[0].mxu0 %v531
        %v2311 = vpop.f32.mrb[0].mxu0
        %v2312 = vadd.f32 0.0, %v2311
        %v2313 = vpop.f32.mrb[0].mxu0
        %v2314 = vadd.f32 0.0, %v2313
        %2315 = vmatprep.mubr.f32.mxu0 %v539
        %2316 = vmatmul.mubr.f32.gmra.mrb[0].mxu0 %v537
        %v2317 = vpop.f32.mrb[0].mxu0
        %v2318 = vadd.f32 0.0, %v2317
        %v2319 = vpop.f32.mrb[0].mxu0
        %v2320 = vadd.f32 0.0, %v2319
        %2321 = vmatprep.mubr.f32.mxu0 %v545
        %2322 = vmatmul.mubr.f32.gmra.mrb[0].mxu0 %v543
        %v2323 = vpop.f32.mrb[0].mxu0
        %v2324 = vadd.f32 0.0, %v2323
        %v2325 = vpop.f32.mrb[0].mxu0
        %v2326 = vadd.f32 0.0, %v2325
        %2327 = vmatprep.mubr.f32.mxu0 %v551
        %2328 = vmatmul.mubr.f32.gmra.mrb[0].mxu0 %v549
        %v2329 = vpop.f32.mrb[0].mxu0
        %v2330 = vadd.f32 0.0, %v2329
        %v2331 = vpop.f32.mrb[0].mxu0
        %v2332 = vadd.f32 0.0, %v2331
        %2333 = vmatprep.mubr.f32.mxu0 %v557
        %2334 = vmatmul.mubr.f32.gmra.mrb[0].mxu0 %v555
        %v2335 = vpop.f32.mrb[0].mxu0
        %v2336 = vadd.f32 0.0, %v2335
        %v2337 = vpop.f32.mrb[0].mxu0
        %v2338 = vadd.f32 0.0, %v2337
        %2339 = vmatprep.mubr.f32.mxu0 %v563
        %2340 = vmatmul.mubr.f32.gmra.mrb[0].mxu0 %v561
        %v2341 = vpop.f32.mrb[0].mxu0
        %v2342 = vadd.f32 0.0, %v2341
        %v2343 = vpop.f32.mrb[0].mxu0
        %v2344 = vadd.f32 0.0, %v2343
        %2345 = vmatprep.mubr.f32.mxu0 %v569
        %2346 = vmatmul.mubr.f32.gmra.mrb[0].mxu0 %v567
        %v2347 = vpop.f32.mrb[0].mxu0
        %v2348 = vadd.f32 0.0, %v2347
        %v2349 = vpop.f32.mrb[0].mxu0
        %v2350 = vadd.f32 0.0, %v2349
        %2351 = vmatprep.mubr.f32.mxu0 %v575
        %2352 = vmatmul.mubr.f32.gmra.mrb[0].mxu0 %v573
        %v2353 = vpop.f32.mrb[0].mxu0
        %v2354 = vadd.f32 0.0, %v2353
        %v2355 = vpop.f32.mrb[0].mxu0
        %v2356 = vadd.f32 0.0, %v2355
        %2357 = vmatprep.mubr.f32.mxu0 %v581
        %2358 = vmatmul.mubr.f32.gmra.mrb[0].mxu0 %v579
        %v2359 = vpop.f32.mrb[0].mxu0
        %v2360 = vadd.f32 0.0, %v2359
        %v2361 = vpop.f32.mrb[0].mxu0
        %v2362 = vadd.f32 0.0, %v2361
        %2363 = vmatprep.mubr.f32.mxu0 %v587
        %2364 = vmatmul.mubr.f32.gmra.mrb[0].mxu0 %v585
        %v2365 = vpop.f32.mrb[0].mxu0
        %v2366 = vadd.f32 0.0, %v2365
        %v2367 = vpop.f32.mrb[0].mxu0
        %v2368 = vadd.f32 0.0, %v2367
        %2369 = vmatprep.mubr.f32.mxu0 %v593
        %2370 = vmatmul.mubr.f32.gmra.mrb[0].mxu0 %v591
        %v2371 = vpop.f32.mrb[0].mxu0
        %v2372 = vadd.f32 0.0, %v2371
        %v2373 = vpop.f32.mrb[0].mxu0
        %v2374 = vadd.f32 0.0, %v2373
        %2375 = vmatprep.mubr.f32.mxu0 %v599
        %2376 = vmatmul.mubr.f32.gmra.mrb[0].mxu0 %v597
        %v2377 = vpop.f32.mrb[0].mxu0
        %v2378 = vadd.f32 0.0, %v2377
        %v2379 = vpop.f32.mrb[0].mxu0
        %v2380 = vadd.f32 0.0, %v2379
        %2381 = vmatprep.mubr.f32.mxu0 %v605
        %2382 = vmatmul.mubr.f32.gmra.mrb[0].mxu0 %v603
        %v2383 = vpop.f32.mrb[0].mxu0
        %v2384 = vadd.f32 0.0, %v2383
        %v2385 = vpop.f32.mrb[0].mxu0
        %v2386 = vadd.f32 0.0, %v2385
        %2387 = vmatprep.mubr.f32.mxu0 %v611
        %2388 = vmatmul.mubr.f32.gmra.mrb[0].mxu0 %v609
        %v2389 = vpop.f32.mrb[0].mxu0
        %v2390 = vadd.f32 0.0, %v2389
        %v2391 = vpop.f32.mrb[0].mxu0
        %v2392 = vadd.f32 0.0, %v2391
        %2393 = vmatprep.mubr.f32.mxu0 %v617
        %2394 = vmatmul.mubr.f32.gmra.mrb[0].mxu0 %v615
        %v2395 = vpop.f32.mrb[0].mxu0
        %v2396 = vadd.f32 0.0, %v2395
        %v2397 = vpop.f32.mrb[0].mxu0
        %v2398 = vadd.f32 0.0, %v2397
        %2399 = vmatprep.mubr.f32.mxu0 %v623
        %2400 = vmatmul.mubr.f32.gmra.mrb[0].mxu0 %v621
        %v2401 = vpop.f32.mrb[0].mxu0
        %v2402 = vadd.f32 0.0, %v2401
        %v2403 = vpop.f32.mrb[0].mxu0
        %v2404 = vadd.f32 0.0, %v2403
        %2405 = vdwg.mxu0
        %2406 = vmatprep.subr.mxu0 %v1963
        %2407 = vmatpush1.msra.mxu0 %v1961
        %2408 = vmatprep.subr.mxu0 %v1967
        %2409 = vmatpush1.msra.mxu0 %v1965
        %2410 = vmatprep.subr.mxu0 %v1971
        %2411 = vmatpush1.msra.mxu0 %v1969
        %2412 = vmatprep.subr.mxu0 %v1975
        %2413 = vmatpush1.msra.mxu0 %v1973
        %2414 = vmatprep.subr.mxu0 %v1979
        %2415 = vmatpush1.msra.mxu0 %v1977
        %2416 = vmatprep.subr.mxu0 %v1983
        %2417 = vmatpush1.msra.mxu0 %v1981
        %2418 = vmatprep.subr.mxu0 %v1987
        %2419 = vmatpush1.msra.mxu0 %v1985
        %2420 = vmatprep.subr.mxu0 %v1991
        %2421 = vmatpush1.msra.mxu0 %v1989
        %2422 = vmatprep.subr.mxu0 %v1995
        %2423 = vmatpush1.msra.mxu0 %v1993
        %2424 = vmatprep.subr.mxu0 %v1999
        %2425 = vmatpush1.msra.mxu0 %v1997
        %2426 = vmatprep.subr.mxu0 %v2003
        %2427 = vmatpush1.msra.mxu0 %v2001
        %2428 = vmatprep.subr.mxu0 %v2007
        %2429 = vmatpush1.msra.mxu0 %v2005
        %2430 = vmatprep.subr.mxu0 %v2011
        %2431 = vmatpush1.msra.mxu0 %v2009
        %2432 = vmatprep.subr.mxu0 %v2015
        %2433 = vmatpush1.msra.mxu0 %v2013
        %2434 = vmatprep.subr.mxu0 %v2019
        %2435 = vmatpush1.msra.mxu0 %v2017
        %2436 = vmatprep.subr.mxu0 %v2023
        %2437 = vmatpush1.msra.mxu0 %v2021
        %2438 = vmatprep.subr.mxu0 %v2027
        %2439 = vmatpush1.msra.mxu0 %v2025
        %2440 = vmatprep.subr.mxu0 %v2031
        %2441 = vmatpush1.msra.mxu0 %v2029
        %2442 = vmatprep.subr.mxu0 %v2035
        %2443 = vmatpush1.msra.mxu0 %v2033
        %2444 = vmatprep.subr.mxu0 %v2039
        %2445 = vmatpush1.msra.mxu0 %v2037
        %2446 = vmatprep.subr.mxu0 %v2043
        %2447 = vmatpush1.msra.mxu0 %v2041
        %2448 = vmatprep.subr.mxu0 %v2047
        %2449 = vmatpush1.msra.mxu0 %v2045
        %2450 = vmatprep.subr.mxu0 %v2051
        %2451 = vmatpush1.msra.mxu0 %v2049
        %2452 = vmatprep.subr.mxu0 %v2055
        %2453 = vmatpush1.msra.mxu0 %v2053
        %2454 = vmatprep.subr.mxu0 %v2059
        %2455 = vmatpush1.msra.mxu0 %v2057
        %2456 = vmatprep.subr.mxu0 %v2063
        %2457 = vmatpush1.msra.mxu0 %v2061
        %2458 = vmatprep.subr.mxu0 %v2067
        %2459 = vmatpush1.msra.mxu0 %v2065
        %2460 = vmatprep.subr.mxu0 %v2071
        %2461 = vmatpush1.msra.mxu0 %v2069
        %2462 = vmatprep.subr.mxu0 %v2075
        %2463 = vmatpush1.msra.mxu0 %v2073
        %2464 = vmatprep.subr.mxu0 %v2079
        %2465 = vmatpush1.msra.mxu0 %v2077
        %2466 = vmatprep.subr.mxu0 %v2083
        %2467 = vmatpush1.msra.mxu0 %v2081
        %2468 = vmatprep.subr.mxu0 %v2087
        %2469 = vmatpush1.msra.mxu0 %v2085
        %2470 = vmatprep.mubr.f32.mxu0 %v629
        %2471 = vmatmul.mubr.f32.gmra.mrb[0].mxu0 %v627
        %v2472 = vpop.f32.mrb[0].mxu0
        %v2473 = vadd.f32 0.0, %v2472
        %v2474 = vpop.f32.mrb[0].mxu0
        %v2475 = vadd.f32 0.0, %v2474
        %2476 = vmatprep.mubr.f32.mxu0 %v635
        %2477 = vmatmul.mubr.f32.gmra.mrb[0].mxu0 %v633
        %v2478 = vpop.f32.mrb[0].mxu0
        %v2479 = vadd.f32 0.0, %v2478
        %v2480 = vpop.f32.mrb[0].mxu0
        %v2481 = vadd.f32 0.0, %v2480
        %2482 = vmatprep.mubr.f32.mxu0 %v641
        %2483 = vmatmul.mubr.f32.gmra.mrb[0].mxu0 %v639
        %v2484 = vpop.f32.mrb[0].mxu0
        %v2485 = vadd.f32 0.0, %v2484
        %v2486 = vpop.f32.mrb[0].mxu0
        %v2487 = vadd.f32 0.0, %v2486
        %2488 = vmatprep.mubr.f32.mxu0 %v647
        %2489 = vmatmul.mubr.f32.gmra.mrb[0].mxu0 %v645
        %v2490 = vpop.f32.mrb[0].mxu0
        %v2491 = vadd.f32 0.0, %v2490
        %v2492 = vpop.f32.mrb[0].mxu0
        %v2493 = vadd.f32 0.0, %v2492
        %2494 = vmatprep.mubr.f32.mxu0 %v653
        %2495 = vmatmul.mubr.f32.gmra.mrb[0].mxu0 %v651
        %v2496 = vpop.f32.mrb[0].mxu0
        %v2497 = vadd.f32 0.0, %v2496
        %v2498 = vpop.f32.mrb[0].mxu0
        %v2499 = vadd.f32 0.0, %v2498
        %2500 = vmatprep.mubr.f32.mxu0 %v659
        %2501 = vmatmul.mubr.f32.gmra.mrb[0].mxu0 %v657
        %v2502 = vpop.f32.mrb[0].mxu0
        %v2503 = vadd.f32 0.0, %v2502
        %v2504 = vpop.f32.mrb[0].mxu0
        %v2505 = vadd.f32 0.0, %v2504
        %2506 = vmatprep.mubr.f32.mxu0 %v665
        %2507 = vmatmul.mubr.f32.gmra.mrb[0].mxu0 %v663
        %v2508 = vpop.f32.mrb[0].mxu0
        %v2509 = vadd.f32 0.0, %v2508
        %v2510 = vpop.f32.mrb[0].mxu0
        %v2511 = vadd.f32 0.0, %v2510
        %2512 = vmatprep.mubr.f32.mxu0 %v671
        %2513 = vmatmul.mubr.f32.gmra.mrb[0].mxu0 %v669
        %v2514 = vpop.f32.mrb[0].mxu0
        %v2515 = vadd.f32 0.0, %v2514
        %v2516 = vpop.f32.mrb[0].mxu0
        %v2517 = vadd.f32 0.0, %v2516
        %2518 = vmatprep.mubr.f32.mxu0 %v677
        %2519 = vmatmul.mubr.f32.gmra.mrb[0].mxu0 %v675
        %v2520 = vpop.f32.mrb[0].mxu0
        %v2521 = vadd.f32 0.0, %v2520
        %v2522 = vpop.f32.mrb[0].mxu0
        %v2523 = vadd.f32 0.0, %v2522
        %2524 = vmatprep.mubr.f32.mxu0 %v683
        %2525 = vmatmul.mubr.f32.gmra.mrb[0].mxu0 %v681
        %v2526 = vpop.f32.mrb[0].mxu0
        %v2527 = vadd.f32 0.0, %v2526
        %v2528 = vpop.f32.mrb[0].mxu0
        %v2529 = vadd.f32 0.0, %v2528
        %2530 = vmatprep.mubr.f32.mxu0 %v689
        %2531 = vmatmul.mubr.f32.gmra.mrb[0].mxu0 %v687
        %v2532 = vpop.f32.mrb[0].mxu0
        %v2533 = vadd.f32 0.0, %v2532
        %v2534 = vpop.f32.mrb[0].mxu0
        %v2535 = vadd.f32 0.0, %v2534
        %2536 = vmatprep.mubr.f32.mxu0 %v695
        %2537 = vmatmul.mubr.f32.gmra.mrb[0].mxu0 %v693
        %v2538 = vpop.f32.mrb[0].mxu0
        %v2539 = vadd.f32 0.0, %v2538
        %v2540 = vpop.f32.mrb[0].mxu0
        %v2541 = vadd.f32 0.0, %v2540
        %2542 = vmatprep.mubr.f32.mxu0 %v701
        %2543 = vmatmul.mubr.f32.gmra.mrb[0].mxu0 %v699
        %v2544 = vpop.f32.mrb[0].mxu0
        %v2545 = vadd.f32 0.0, %v2544
        %v2546 = vpop.f32.mrb[0].mxu0
        %v2547 = vadd.f32 0.0, %v2546
        %2548 = vmatprep.mubr.f32.mxu0 %v707
        %2549 = vmatmul.mubr.f32.gmra.mrb[0].mxu0 %v705
        %v2550 = vpop.f32.mrb[0].mxu0
        %v2551 = vadd.f32 0.0, %v2550
        %v2552 = vpop.f32.mrb[0].mxu0
        %v2553 = vadd.f32 0.0, %v2552
        %2554 = vmatprep.mubr.f32.mxu0 %v713
        %2555 = vmatmul.mubr.f32.gmra.mrb[0].mxu0 %v711
        %v2556 = vpop.f32.mrb[0].mxu0
        %v2557 = vadd.f32 0.0, %v2556
        %v2558 = vpop.f32.mrb[0].mxu0
        %v2559 = vadd.f32 0.0, %v2558
        %2560 = vmatprep.mubr.f32.mxu0 %v719
        %2561 = vmatmul.mubr.f32.gmra.mrb[0].mxu0 %v717
        %v2562 = vpop.f32.mrb[0].mxu0
        %v2563 = vadd.f32 0.0, %v2562
        %v2564 = vpop.f32.mrb[0].mxu0
        %v2565 = vadd.f32 0.0, %v2564
        %2566 = vdwg.mxu0
        %v2567 = vmul.f32 %v2312, %v2241
        %v2568 = vmul.f32 %v2314, %v2242
        %v2569 = vmul.f32 %v2318, %v2241
        %v2570 = vmul.f32 %v2320, %v2242
        %v2571 = vmul.f32 %v2324, %v2241
        %v2572 = vmul.f32 %v2326, %v2242
        %v2573 = vmul.f32 %v2330, %v2241
        %v2574 = vmul.f32 %v2332, %v2242
        %v2575 = vmul.f32 %v2336, %v2241
        %v2576 = vmul.f32 %v2338, %v2242
        %v2577 = vmul.f32 %v2342, %v2241
        %v2578 = vmul.f32 %v2344, %v2242
        %v2579 = vmul.f32 %v2348, %v2241
        %v2580 = vmul.f32 %v2350, %v2242
        %v2581 = vmul.f32 %v2354, %v2241
        %v2582 = vmul.f32 %v2356, %v2242
        %v2583 = vmul.f32 %v2360, %v2241
        %v2584 = vmul.f32 %v2362, %v2242
        %v2585 = vmul.f32 %v2366, %v2241
        %v2586 = vmul.f32 %v2368, %v2242
        %v2587 = vmul.f32 %v2372, %v2241
        %v2588 = vmul.f32 %v2374, %v2242
        %v2589 = vmul.f32 %v2378, %v2241
        %v2590 = vmul.f32 %v2380, %v2242
        %v2591 = vmul.f32 %v2384, %v2241
        %v2592 = vmul.f32 %v2386, %v2242
        %v2593 = vmul.f32 %v2390, %v2241
        %v2594 = vmul.f32 %v2392, %v2242
        %v2595 = vmul.f32 %v2396, %v2241
        %v2596 = vmul.f32 %v2398, %v2242
        %v2597 = vmul.f32 %v2402, %v2241
        %v2598 = vmul.f32 %v2404, %v2242
        %v2599 = vmul.f32 %v2473, %v2243
        %v2600 = vmul.f32 %v2475, %v2244
        %v2601 = vmul.f32 %v2479, %v2243
        %v2602 = vmul.f32 %v2481, %v2244
        %v2603 = vmul.f32 %v2485, %v2243
        %v2604 = vmul.f32 %v2487, %v2244
        %v2605 = vmul.f32 %v2491, %v2243
        %v2606 = vmul.f32 %v2493, %v2244
        %v2607 = vmul.f32 %v2497, %v2243
        %v2608 = vmul.f32 %v2499, %v2244
        %v2609 = vmul.f32 %v2503, %v2243
        %v2610 = vmul.f32 %v2505, %v2244
        %v2611 = vmul.f32 %v2509, %v2243
        %v2612 = vmul.f32 %v2511, %v2244
        %v2613 = vmul.f32 %v2515, %v2243
        %v2614 = vmul.f32 %v2517, %v2244
        %v2615 = vmul.f32 %v2521, %v2243
        %v2616 = vmul.f32 %v2523, %v2244
        %v2617 = vmul.f32 %v2527, %v2243
        %v2618 = vmul.f32 %v2529, %v2244
        %v2619 = vmul.f32 %v2533, %v2243
        %v2620 = vmul.f32 %v2535, %v2244
        %v2621 = vmul.f32 %v2539, %v2243
        %v2622 = vmul.f32 %v2541, %v2244
        %v2623 = vmul.f32 %v2545, %v2243
        %v2624 = vmul.f32 %v2547, %v2244
        %v2625 = vmul.f32 %v2551, %v2243
        %v2626 = vmul.f32 %v2553, %v2244
        %v2627 = vmul.f32 %v2557, %v2243
        %v2628 = vmul.f32 %v2559, %v2244
        %v2629 = vmul.f32 %v2563, %v2243
        %v2630 = vmul.f32 %v2565, %v2244
        %v2631 = vadd.f32 %v336, %v2567
        %v2632 = vadd.f32 %v337, %v2568
        %v2633 = vadd.f32 %v338, %v2569
        %v2634 = vadd.f32 %v339, %v2570
        %v2635 = vadd.f32 %v340, %v2571
        %v2636 = vadd.f32 %v341, %v2572
        %v2637 = vadd.f32 %v342, %v2573
        %v2638 = vadd.f32 %v343, %v2574
        %v2639 = vadd.f32 %v344, %v2575
        %v2640 = vadd.f32 %v345, %v2576
        %v2641 = vadd.f32 %v346, %v2577
        %v2642 = vadd.f32 %v347, %v2578
        %v2643 = vadd.f32 %v348, %v2579
        %v2644 = vadd.f32 %v349, %v2580
        %v2645 = vadd.f32 %v350, %v2581
        %v2646 = vadd.f32 %v351, %v2582
        %v2647 = vadd.f32 %v352, %v2583
        %v2648 = vadd.f32 %v353, %v2584
        %v2649 = vadd.f32 %v354, %v2585
        %v2650 = vadd.f32 %v355, %v2586
        %v2651 = vadd.f32 %v356, %v2587
        %v2652 = vadd.f32 %v357, %v2588
        %v2653 = vadd.f32 %v358, %v2589
        %v2654 = vadd.f32 %v359, %v2590
        %v2655 = vadd.f32 %v360, %v2591
        %v2656 = vadd.f32 %v361, %v2592
        %v2657 = vadd.f32 %v362, %v2593
        %v2658 = vadd.f32 %v363, %v2594
        %v2659 = vadd.f32 %v364, %v2595
        %v2660 = vadd.f32 %v365, %v2596
        %v2661 = vadd.f32 %v366, %v2597
        %v2662 = vadd.f32 %v367, %v2598
        %v2663 = vadd.f32 %v368, %v2599
        %v2664 = vadd.f32 %v369, %v2600
        %v2665 = vadd.f32 %v370, %v2601
        %v2666 = vadd.f32 %v371, %v2602
        %v2667 = vadd.f32 %v372, %v2603
        %v2668 = vadd.f32 %v373, %v2604
        %v2669 = vadd.f32 %v374, %v2605
        %v2670 = vadd.f32 %v375, %v2606
        %v2671 = vadd.f32 %v376, %v2607
        %v2672 = vadd.f32 %v377, %v2608
        %v2673 = vadd.f32 %v378, %v2609
        %v2674 = vadd.f32 %v379, %v2610
        %v2675 = vadd.f32 %v380, %v2611
        %v2676 = vadd.f32 %v381, %v2612
        %v2677 = vadd.f32 %v382, %v2613
        %v2678 = vadd.f32 %v383, %v2614
        %v2679 = vadd.f32 %v384, %v2615
        %v2680 = vadd.f32 %v385, %v2616
        %v2681 = vadd.f32 %v386, %v2617
        %v2682 = vadd.f32 %v387, %v2618
        %v2683 = vadd.f32 %v388, %v2619
        %v2684 = vadd.f32 %v389, %v2620
        %v2685 = vadd.f32 %v390, %v2621
        %v2686 = vadd.f32 %v391, %v2622
        %v2687 = vadd.f32 %v392, %v2623
        %v2688 = vadd.f32 %v393, %v2624
        %v2689 = vadd.f32 %v394, %v2625
        %v2690 = vadd.f32 %v395, %v2626
        %v2691 = vadd.f32 %v396, %v2627
        %v2692 = vadd.f32 %v397, %v2628
        %v2693 = vadd.f32 %v398, %v2629
        %v2694 = vadd.f32 %v399, %v2630
        %2695 = vst [vmem:[%s335] sm:$0xff] %v2631
        %2696 = vst [vmem:[%s335 + $0x8] sm:$0xff] %v2632
        %2697 = vst [vmem:[%s335 + $0x10] sm:$0xff] %v2633
        %2698 = vst [vmem:[%s335 + $0x18] sm:$0xff] %v2634
        %2699 = vst [vmem:[%s335 + $0x20] sm:$0xff] %v2635
        %2700 = vst [vmem:[%s335 + $0x28] sm:$0xff] %v2636
        %2701 = vst [vmem:[%s335 + $0x30] sm:$0xff] %v2637
        %2702 = vst [vmem:[%s335 + $0x38] sm:$0xff] %v2638
        %2703 = vst [vmem:[%s335 + $0x40] sm:$0xff] %v2639
        %2704 = vst [vmem:[%s335 + $0x48] sm:$0xff] %v2640
        %2705 = vst [vmem:[%s335 + $0x50] sm:$0xff] %v2641
        %2706 = vst [vmem:[%s335 + $0x58] sm:$0xff] %v2642
        %2707 = vst [vmem:[%s335 + $0x60] sm:$0xff] %v2643
        %2708 = vst [vmem:[%s335 + $0x68] sm:$0xff] %v2644
        %2709 = vst [vmem:[%s335 + $0x70] sm:$0xff] %v2645
        %2710 = vst [vmem:[%s335 + $0x78] sm:$0xff] %v2646
        %2711 = vst [vmem:[%s335 + $0x80] sm:$0xff] %v2647
        %2712 = vst [vmem:[%s335 + $0x88] sm:$0xff] %v2648
        %2713 = vst [vmem:[%s335 + $0x90] sm:$0xff] %v2649
        %2714 = vst [vmem:[%s335 + $0x98] sm:$0xff] %v2650
        %2715 = vst [vmem:[%s335 + $0xa0] sm:$0xff] %v2651
        %2716 = vst [vmem:[%s335 + $0xa8] sm:$0xff] %v2652
        %2717 = vst [vmem:[%s335 + $0xb0] sm:$0xff] %v2653
        %2718 = vst [vmem:[%s335 + $0xb8] sm:$0xff] %v2654
        %2719 = vst [vmem:[%s335 + $0xc0] sm:$0xff] %v2655
        %2720 = vst [vmem:[%s335 + $0xc8] sm:$0xff] %v2656
        %2721 = vst [vmem:[%s335 + $0xd0] sm:$0xff] %v2657
        %2722 = vst [vmem:[%s335 + $0xd8] sm:$0xff] %v2658
        %2723 = vst [vmem:[%s335 + $0xe0] sm:$0xff] %v2659
        %2724 = vst [vmem:[%s335 + $0xe8] sm:$0xff] %v2660
        %2725 = vst [vmem:[%s335 + $0xf0] sm:$0xff] %v2661
        %2726 = vst [vmem:[%s335 + $0xf8] sm:$0xff] %v2662
        %2727 = vst [vmem:[%s335 + $0x100] sm:$0xff] %v2663
        %2728 = vst [vmem:[%s335 + $0x108] sm:$0xff] %v2664
        %2729 = vst [vmem:[%s335 + $0x110] sm:$0xff] %v2665
        %2730 = vst [vmem:[%s335 + $0x118] sm:$0xff] %v2666
        %2731 = vst [vmem:[%s335 + $0x120] sm:$0xff] %v2667
        %2732 = vst [vmem:[%s335 + $0x128] sm:$0xff] %v2668
        %2733 = vst [vmem:[%s335 + $0x130] sm:$0xff] %v2669
        %2734 = vst [vmem:[%s335 + $0x138] sm:$0xff] %v2670
        %2735 = vst [vmem:[%s335 + $0x140] sm:$0xff] %v2671
        %2736 = vst [vmem:[%s335 + $0x148] sm:$0xff] %v2672
        %2737 = vst [vmem:[%s335 + $0x150] sm:$0xff] %v2673
        %2738 = vst [vmem:[%s335 + $0x158] sm:$0xff] %v2674
        %2739 = vst [vmem:[%s335 + $0x160] sm:$0xff] %v2675
        %2740 = vst [vmem:[%s335 + $0x168] sm:$0xff] %v2676
        %2741 = vst [vmem:[%s335 + $0x170] sm:$0xff] %v2677
        %2742 = vst [vmem:[%s335 + $0x178] sm:$0xff] %v2678
        %2743 = vst [vmem:[%s335 + $0x180] sm:$0xff] %v2679
        %2744 = vst [vmem:[%s335 + $0x188] sm:$0xff] %v2680
        %2745 = vst [vmem:[%s335 + $0x190] sm:$0xff] %v2681
        %2746 = vst [vmem:[%s335 + $0x198] sm:$0xff] %v2682
        %2747 = vst [vmem:[%s335 + $0x1a0] sm:$0xff] %v2683
        %2748 = vst [vmem:[%s335 + $0x1a8] sm:$0xff] %v2684
        %2749 = vst [vmem:[%s335 + $0x1b0] sm:$0xff] %v2685
        %2750 = vst [vmem:[%s335 + $0x1b8] sm:$0xff] %v2686
        %2751 = vst [vmem:[%s335 + $0x1c0] sm:$0xff] %v2687
        %2752 = vst [vmem:[%s335 + $0x1c8] sm:$0xff] %v2688
        %2753 = vst [vmem:[%s335 + $0x1d0] sm:$0xff] %v2689
        %2754 = vst [vmem:[%s335 + $0x1d8] sm:$0xff] %v2690
        %2755 = vst [vmem:[%s335 + $0x1e0] sm:$0xff] %v2691
        %2756 = vst [vmem:[%s335 + $0x1e8] sm:$0xff] %v2692
        %2757 = vst [vmem:[%s335 + $0x1f0] sm:$0xff] %v2693
        %2758 = vst [vmem:[%s335 + $0x1f8] sm:$0xff] %v2694
        %s2759 = sand.u32 %s155, 1
        %s2760 = scalar_lea.sflag [#allocation5], %s2759
        %s2761 = sand.u32 %s155, 1
        %s2762 = smul.addr %s2761, 512
        %s2763 = scalar_lea.vmem [#allocation11], %s2762
        // Predicated region
        $region57: #{tpu_custom_call.1} parent=39 // pred_check
          %p2764 = pneg %p165
        $region58: #{tpu_custom_call.1} parent=39 // pred_check_branch
          %2766 = sbr.rel (%p2764) target = $region60
        $region59: #{tpu_custom_call.1} parent=39 // pred_region
          %s2768 = ssub.s32 8192, 8192
          %2769 = vsyncadd %s2760, %s2768
          %s2770 = smul.addr %s27, 64
          %s2771 = smul.addr %s2770, 128
          %s2772 = scalar_lea.hbm %s5, %s2771
          %s2773 = sshll.u32 %s2763, 4
          %s2774 = int_to_ptr.vmem [resolvable:$true] %s2773
          %2779 = dma.vmem_to_hbm [thread:$0]  %s2774, 8192, %s2772, %s2760, 256, 256, 16
        $region60: #{tpu_custom_call.1} parent=39 // pred_fallthru
          _
      $region40: #{tpu_custom_call.1} parent=5 // pred_fallthru
        _
      %p2780 = scmp.le.s32.totalorder 2, %s22
      // Predicated region
      $region61: #{tpu_custom_call.1} parent=5 // pred_check
        %p2781 = pneg %p2780
      $region62: #{tpu_custom_call.1} parent=5 // pred_check_branch
        %2783 = sbr.rel (%p2781) target = $region64
      $region63: #{tpu_custom_call.1} parent=5 // pred_region
        %s2784 = ssub.s32 %s22, 2
        // Predicated region
        $region65: #{tpu_custom_call.1} parent=63 // pred_check
          %p2785 = pneg %p171
        $region66: #{tpu_custom_call.1} parent=63 // pred_check_branch
          %2787 = sbr.rel (%p2785) target = $region68
        $region67: #{tpu_custom_call.1} parent=63 // pred_region
          %s2788 = sand.u32 %s156, 1
          %s2789 = scalar_lea.sflag [#allocation5], %s2788
          %s2790 = sand.u32 %s156, 1
          %s2791 = smul.addr %s2790, 512
          %s2792 = scalar_lea.vmem [#allocation11], %s2791
          %2793 = dma.done %s2789, 8192
        $region68: #{tpu_custom_call.1} parent=63 // pred_fallthru
          _
      $region64: #{tpu_custom_call.1} parent=5 // pred_fallthru
        _
    $region6: #{tpu_custom_call.1} parent=1 // loop_footer
      %s26 = sadd.s32 1, %s22
    $region7: #{tpu_custom_call.1} parent=1 // loop_footer_branch
      %21 = sbr.rel target = $region3
    $region8: #{tpu_custom_call.1} parent=1 // loop_exit
      _
    %2794 = vsyncpa [#allocation4], 1
    %s2795 = scalar_lea.sflag [#allocation4], 1
    %2796 = vsyncpa %s2795, 1
    %2797 = vsyncpa [#allocation7], 1
    %s2798 = scalar_lea.sflag [#allocation7], 1
    %2799 = vsyncpa %s2798, 1
    %2800 = vsyncpa [#allocation10], 1
    %2801 = vsyncpa [#allocation5], 1
    %s2802 = scalar_lea.sflag [#allocation5], 1
    %2803 = vsyncpa %s2802, 1

</llo_original>
